<compile_context>
chip_gen: v6e
topology: v6e:2x2x1
jax: 0.10.0
libtpu: 0.0.40
codegen_flags: <defaults>
</compile_context>

<pallas_src>
import functools

import jax
import jax.numpy as jnp
from jax import lax
from jax.experimental import pallas as pl
from jax.experimental.pallas import tpu as pltpu


def _layernorm(x, gamma, beta, eps=1e-5):
    mu = jnp.mean(x, axis=-1, keepdims=True)
    var = jnp.mean((x - mu) ** 2, axis=-1, keepdims=True)
    return (x - mu) * lax.rsqrt(var + eps) * gamma + beta


def block_kernel(x_ref, wqkv_ref, wo_ref, bo_ref, w1_ref, b1_ref, w2_ref,
                 b2_ref, g1_ref, be1_ref, g2_ref, be2_ref, o_ref,
                 q_ref, k_ref, v_ref, slab_ref, *, n_head):
    T, C = x_ref.shape
    hs = C // n_head

    x = x_ref[...].astype(jnp.float32)            # (T, C) f32 for residual / LN
    xb = x.astype(jnp.bfloat16)

    # ---- full-width Q/K/V projections (scale already folded into Wq) --------
    q_ref[...] = jnp.dot(xb, wqkv_ref[0],
                         preferred_element_type=jnp.float32).astype(jnp.bfloat16)
    k_ref[...] = jnp.dot(xb, wqkv_ref[1],
                         preferred_element_type=jnp.float32).astype(jnp.bfloat16)
    v_ref[...] = jnp.dot(xb, wqkv_ref[2],
                         preferred_element_type=jnp.float32).astype(jnp.bfloat16)

    # ---- causal mask as additive bias, built once per step ------------------
    row = lax.broadcasted_iota(jnp.int32, (T, T), 0)
    col = lax.broadcasted_iota(jnp.int32, (T, T), 1)
    neg_bias = jnp.where(row >= col, 0.0, -1e30).astype(jnp.float32)

    # ---- per-head attention; each head's output lands in its slab columns ---
    for h in range(n_head):
        c0 = h * hs
        qh = q_ref[:, c0:c0 + hs]                 # (T, hs) bf16
        kh = k_ref[:, c0:c0 + hs]
        vh = v_ref[:, c0:c0 + hs]
        s = lax.dot_general(qh, kh, (((1,), (1,)), ((), ())),
                            preferred_element_type=jnp.float32) + neg_bias
        m = jnp.max(s, axis=-1, keepdims=True)
        p = jnp.exp(s - m)
        l_inv = pl.reciprocal(jnp.sum(p, axis=-1, keepdims=True), approx=True)
        oh = jnp.dot(p.astype(jnp.bfloat16), vh,
                     preferred_element_type=jnp.float32) * l_inv
        slab_ref[:, c0:c0 + hs] = oh.astype(jnp.bfloat16)

    # ---- single full-width output projection + residual + LN1 ---------------
    sa = jnp.dot(slab_ref[...], wo_ref[...],
                 preferred_element_type=jnp.float32) + bo_ref[...]
    x1 = _layernorm(x + sa, g1_ref[...], be1_ref[...])
    x1b = x1.astype(jnp.bfloat16)

    # ---- FFN: hidden dim in lane-chunks to bound live ranges ----------------
    hid = w1_ref.shape[1]
    chunk = 512 if (hid > 512 and hid % 512 == 0) else hid
    ff = jnp.zeros((T, C), jnp.float32)
    for c0 in range(0, hid, chunk):
        hc = (jnp.dot(x1b, w1_ref[:, c0:c0 + chunk],
                      preferred_element_type=jnp.float32)
              + b1_ref[:, c0:c0 + chunk])
        hc = jnp.maximum(hc, 0.0).astype(jnp.bfloat16)
        ff = ff + jnp.dot(hc, w2_ref[c0:c0 + chunk, :],
                          preferred_element_type=jnp.float32)
    ff = ff + b2_ref[...]
    # TODO(synk): nn.Dropout layers omitted (identity at inference / p = 0.0).

    o_ref[...] = _layernorm(x1 + ff, g2_ref[...],
                            be2_ref[...]).astype(o_ref.dtype)


def _vmem_limit_bytes(T, C):
    """Explicit scoped-VMEM budget, clamped to the chip's physical VMEM."""
    bf16, f32 = 2, 4
    hid = 4 * C
    weights = 2 * ((3 * C * C + C * C + C * hid + hid * C) * bf16
                   + (2 * C + hid + 4 * C) * f32)   # consts (double-buffer worst case)
    io = 2 * 2 * T * C * f32                        # x + out blocks, double-buffered
    scratch = 4 * T * C * bf16                      # q / k / v / attention slab
    temps = (2 * T * T + 8 * T * C) * f32           # scores + f32 temporaries
    need = 2 * (weights + io + scratch + temps)     # headroom for compiler temps
    try:
        cap = pltpu.get_tpu_info().vmem_capacity_bytes - (8 << 20)
    except Exception:
        cap = 56 << 20                              # v7x-safe fallback (< 64 MiB)
    return int(min(cap, max(32 << 20, need)))


def transformer_block(x, params, n_head):
    B, T, C = x.shape
    assert C % n_head == 0
    hs = C // n_head
    f32, bf16 = jnp.float32, jnp.bfloat16
    scale = float(hs) ** -0.5

    # ---- wrapper-side weight prep (one-off XLA): fold scale into Wq ---------
    wqkv = jnp.stack([params["wq"] * scale, params["wk"], params["wv"]],
                     axis=0).astype(bf16)                       # (3, C, C)
    wo = params["wo"].astype(bf16)                              # (C, C)
    w1 = params["w1"].astype(bf16)                              # (C, 4C)
    w2 = params["w2"].astype(bf16)                              # (4C, C)
    bo, b1, b2 = (params[n].astype(f32) for n in ("bo", "b1", "b2"))
    g1, be1, g2, be2 = (params[n].astype(f32) for n in ("g1", "be1", "g2", "be2"))

    def _const_spec(arr):
        # Constant index map -> the pipeline fetches this block once per call.
        return pl.BlockSpec(arr.shape, lambda b, _n=arr.ndim: (0,) * _n)

    consts = (wqkv, wo, bo, w1, b1, w2, b2, g1, be1, g2, be2)
    in_specs = ([pl.BlockSpec((None, T, C), lambda b: (b, 0, 0))]   # x
                + [_const_spec(a) for a in consts])
    out_specs = pl.BlockSpec((None, T, C), lambda b: (b, 0, 0))

    kernel = functools.partial(block_kernel, n_head=n_head)

    return pl.pallas_call(
        kernel,
        out_shape=jax.ShapeDtypeStruct((B, T, C), x.dtype),
        grid_spec=pltpu.PrefetchScalarGridSpec(
            num_scalar_prefetch=0,
            grid=(B,),
            in_specs=in_specs,
            out_specs=out_specs,
            scratch_shapes=[pltpu.VMEM((T, C), bf16),   # Q
                            pltpu.VMEM((T, C), bf16),   # K
                            pltpu.VMEM((T, C), bf16),   # V
                            pltpu.VMEM((T, C), bf16)],  # per-head output slab
        ),
        compiler_params=pltpu.CompilerParams(
            dimension_semantics=("parallel",),
            vmem_limit_bytes=_vmem_limit_bytes(T, C)),
    )(x, *consts)


# ------------------------- pure-JAX reference (f32) -------------------------
def ref_block(x, p, n_head):
    B, T, C = x.shape
    hs = C // n_head
    q = (x @ p["wq"]).reshape(B, T, n_head, hs)
    k = (x @ p["wk"]).reshape(B, T, n_head, hs)
    v = (x @ p["wv"]).reshape(B, T, n_head, hs)
    wei = jnp.einsum("bthd,bshd->bhts", q, k) * (hs ** -0.5)
    mask = jnp.tril(jnp.ones((T, T), bool))
    wei = jnp.where(mask, wei, -1e30)
    att = jax.nn.softmax(wei, axis=-1)
    sa = jnp.einsum("bhts,bshd->bthd", att, v).reshape(B, T, C)
    sa = sa @ p["wo"] + p["bo"]
    x1 = _layernorm(x + sa, p["g1"], p["be1"])
    ff = jnp.maximum(x1 @ p["w1"] + p["b1"], 0.0) @ p["w2"] + p["b2"]
    return _layernorm(x1 + ff, p["g2"], p["be2"])


def init_params(key, n_embd):
    hidden = 4 * n_embd
    ks = jax.random.split(key, 8)
    s = 0.02
    return dict(
        wq=jax.random.normal(ks[0], (n_embd, n_embd), jnp.float32) * s,
        wk=jax.random.normal(ks[1], (n_embd, n_embd), jnp.float32) * s,
        wv=jax.random.normal(ks[2], (n_embd, n_embd), jnp.float32) * s,
        wo=jax.random.normal(ks[3], (n_embd, n_embd), jnp.float32) * s,
        bo=jax.random.normal(ks[4], (1, n_embd), jnp.float32) * s,
        w1=jax.random.normal(ks[5], (n_embd, hidden), jnp.float32) * s,
        b1=jax.random.normal(ks[6], (1, hidden), jnp.float32) * s,
        w2=jax.random.normal(ks[7], (hidden, n_embd), jnp.float32) * s,
        b2=jnp.zeros((1, n_embd), jnp.float32),
        g1=jnp.ones((1, n_embd), jnp.float32),
        be1=jnp.zeros((1, n_embd), jnp.float32),
        g2=jnp.ones((1, n_embd), jnp.float32),
        be2=jnp.zeros((1, n_embd), jnp.float32),
    )


if __name__ == "__main__":
    B, block_size, n_embd, n_head = 2, 8, 32, 4   # dropout = 0.0
    key = jax.random.PRNGKey(0)
    kx, kp = jax.random.split(key)
    x = jax.random.normal(kx, (B, block_size, n_embd), jnp.float32)
    params = init_params(kp, n_embd)

    out = jax.block_until_ready(transformer_block(x, params, n_head))
    ref = jax.block_until_ready(ref_block(x, params, n_head))

    assert out.shape == (B, block_size, n_embd)
    # Kernel uses bf16 MXU operands + approximate reciprocal; reference is all-f32.
    assert jnp.allclose(out, ref, atol=2e-2, rtol=2e-2), "mismatch vs reference"
    print("KERNEL_OK")
</pallas_src>

<mosaic_0001>
module attributes {stable_mosaic.version = 11 : i64} {
  func.func @block_kernel(%arg0: i32, %arg1: memref<1x8x32xf32, #tpu.memory_space<vmem>>, %arg2: memref<3x32x32xbf16, #tpu.memory_space<vmem>>, %arg3: memref<32x32xbf16, #tpu.memory_space<vmem>>, %arg4: memref<1x32xf32, #tpu.memory_space<vmem>>, %arg5: memref<32x128xbf16, #tpu.memory_space<vmem>>, %arg6: memref<1x128xf32, #tpu.memory_space<vmem>>, %arg7: memref<128x32xbf16, #tpu.memory_space<vmem>>, %arg8: memref<1x32xf32, #tpu.memory_space<vmem>>, %arg9: memref<1x32xf32, #tpu.memory_space<vmem>>, %arg10: memref<1x32xf32, #tpu.memory_space<vmem>>, %arg11: memref<1x32xf32, #tpu.memory_space<vmem>>, %arg12: memref<1x32xf32, #tpu.memory_space<vmem>>, %arg13: memref<1x8x32xf32, #tpu.memory_space<vmem>>, %arg14: memref<8x32xbf16, #tpu.memory_space<vmem>>, %arg15: memref<8x32xbf16, #tpu.memory_space<vmem>>, %arg16: memref<8x32xbf16, #tpu.memory_space<vmem>>, %arg17: memref<8x32xbf16, #tpu.memory_space<vmem>>) attributes {dimension_semantics = [#tpu.dimension_semantics<parallel>], iteration_bounds = array<i64: 2>, scalar_prefetch = 0 : i64, scratch_operands = 4 : i64, tpu.core_type = #tpu.core_type<tc>, window_params = [{transform_indices = @transform_0, window_bounds = array<i64: 1, 8, 32>}, {pipeline_mode = #tpu.pipeline_mode<synchronous>, transform_indices = @transform_1, window_bounds = array<i64: 3, 32, 32>}, {pipeline_mode = #tpu.pipeline_mode<synchronous>, transform_indices = @transform_2, window_bounds = array<i64: 32, 32>}, {pipeline_mode = #tpu.pipeline_mode<synchronous>, transform_indices = @transform_3, window_bounds = array<i64: 1, 32>}, {pipeline_mode = #tpu.pipeline_mode<synchronous>, transform_indices = @transform_4, window_bounds = array<i64: 32, 128>}, {pipeline_mode = #tpu.pipeline_mode<synchronous>, transform_indices = @transform_5, window_bounds = array<i64: 1, 128>}, {pipeline_mode = #tpu.pipeline_mode<synchronous>, transform_indices = @transform_6, window_bounds = array<i64: 128, 32>}, {pipeline_mode = #tpu.pipeline_mode<synchronous>, transform_indices = @transform_7, window_bounds = array<i64: 1, 32>}, {pipeline_mode = #tpu.pipeline_mode<synchronous>, transform_indices = @transform_8, window_bounds = array<i64: 1, 32>}, {pipeline_mode = #tpu.pipeline_mode<synchronous>, transform_indices = @transform_9, window_bounds = array<i64: 1, 32>}, {pipeline_mode = #tpu.pipeline_mode<synchronous>, transform_indices = @transform_10, window_bounds = array<i64: 1, 32>}, {pipeline_mode = #tpu.pipeline_mode<synchronous>, transform_indices = @transform_11, window_bounds = array<i64: 1, 32>}, {transform_indices = @transform_12, window_bounds = array<i64: 1, 8, 32>}]} {
    %c0 = arith.constant 0 : index
    %c0_0 = arith.constant 0 : index
    %c0_1 = arith.constant 0 : index
    %0 = vector.load %arg1[%c0, %c0_0, %c0_1] : memref<1x8x32xf32, #tpu.memory_space<vmem>>, vector<1x8x32xf32>
    %1 = vector.shape_cast %0 : vector<1x8x32xf32> to vector<8x32xf32>
    %2 = arith.truncf %1 : vector<8x32xf32> to vector<8x32xbf16>
    %c0_2 = arith.constant 0 : index
    %c0_3 = arith.constant 0 : index
    %c0_4 = arith.constant 0 : index
    %3 = vector.load %arg2[%c0_2, %c0_3, %c0_4] : memref<3x32x32xbf16, #tpu.memory_space<vmem>>, vector<1x32x32xbf16>
    %4 = vector.shape_cast %3 : vector<1x32x32xbf16> to vector<32x32xbf16>
    %cst = arith.constant dense<0.000000e+00> : vector<8x32xf32>
    %5 = tpu.matmul %2, %4, %cst {dimension_numbers = #tpu.dot_dimension_numbers<[1], [0], [0], [1], [0, 0, 1, 1], [], []>} : vector<8x32xbf16>, vector<32x32xbf16>, vector<8x32xf32> -> vector<8x32xf32>
    %6 = arith.truncf %5 : vector<8x32xf32> to vector<8x32xbf16>
    %c0_5 = arith.constant 0 : index
    %c0_6 = arith.constant 0 : index
    %7 = vector.load %arg14[%c0_5, %c0_6] : memref<8x32xbf16, #tpu.memory_space<vmem>>, vector<8x32xbf16>
    tpu.vector_store %arg14[%c0_5, %c0_6], %6 {strides = array<i32>} : memref<8x32xbf16, #tpu.memory_space<vmem>>, vector<8x32xbf16>,
    %c1 = arith.constant 1 : index
    %c0_7 = arith.constant 0 : index
    %c0_8 = arith.constant 0 : index
    %8 = vector.load %arg2[%c1, %c0_7, %c0_8] : memref<3x32x32xbf16, #tpu.memory_space<vmem>>, vector<1x32x32xbf16>
    %9 = vector.shape_cast %8 : vector<1x32x32xbf16> to vector<32x32xbf16>
    %cst_9 = arith.constant dense<0.000000e+00> : vector<8x32xf32>
    %10 = tpu.matmul %2, %9, %cst_9 {dimension_numbers = #tpu.dot_dimension_numbers<[1], [0], [0], [1], [0, 0, 1, 1], [], []>} : vector<8x32xbf16>, vector<32x32xbf16>, vector<8x32xf32> -> vector<8x32xf32>
    %11 = arith.truncf %10 : vector<8x32xf32> to vector<8x32xbf16>
    %c0_10 = arith.constant 0 : index
    %c0_11 = arith.constant 0 : index
    %12 = vector.load %arg15[%c0_10, %c0_11] : memref<8x32xbf16, #tpu.memory_space<vmem>>, vector<8x32xbf16>
    tpu.vector_store %arg15[%c0_10, %c0_11], %11 {strides = array<i32>} : memref<8x32xbf16, #tpu.memory_space<vmem>>, vector<8x32xbf16>,
    %c2 = arith.constant 2 : index
    %c0_12 = arith.constant 0 : index
    %c0_13 = arith.constant 0 : index
    %13 = vector.load %arg2[%c2, %c0_12, %c0_13] : memref<3x32x32xbf16, #tpu.memory_space<vmem>>, vector<1x32x32xbf16>
    %14 = vector.shape_cast %13 : vector<1x32x32xbf16> to vector<32x32xbf16>
    %cst_14 = arith.constant dense<0.000000e+00> : vector<8x32xf32>
    %15 = tpu.matmul %2, %14, %cst_14 {dimension_numbers = #tpu.dot_dimension_numbers<[1], [0], [0], [1], [0, 0, 1, 1], [], []>} : vector<8x32xbf16>, vector<32x32xbf16>, vector<8x32xf32> -> vector<8x32xf32>
    %16 = arith.truncf %15 : vector<8x32xf32> to vector<8x32xbf16>
    %c0_15 = arith.constant 0 : index
    %c0_16 = arith.constant 0 : index
    %17 = vector.load %arg16[%c0_15, %c0_16] : memref<8x32xbf16, #tpu.memory_space<vmem>>, vector<8x32xbf16>
    tpu.vector_store %arg16[%c0_15, %c0_16], %16 {strides = array<i32>} : memref<8x32xbf16, #tpu.memory_space<vmem>>, vector<8x32xbf16>,
    %18 = tpu.iota {dimensions = array<i32: 0>} : vector<8x8xi32>
    %19 = tpu.iota {dimensions = array<i32: 1>} : vector<8x8xi32>
    %20 = arith.cmpi sge, %18, %19 : vector<8x8xi32>
    %cst_17 = arith.constant 0.000000e+00 : f32
    %cst_18 = arith.constant -1.000000e+30 : f32
    %21 = vector.broadcast %cst_17 : f32 to vector<8x8xf32>
    %22 = vector.broadcast %cst_18 : f32 to vector<8x8xf32>
    %23 = arith.select %20, %21, %22 : vector<8x8xi1>, vector<8x8xf32>
    %c0_19 = arith.constant 0 : index
    %c0_20 = arith.constant 0 : index
    %24 = vector.load %arg14[%c0_19, %c0_20] : memref<8x32xbf16, #tpu.memory_space<vmem>>, vector<8x8xbf16>
    %c0_21 = arith.constant 0 : index
    %c0_22 = arith.constant 0 : index
    %25 = vector.load %arg15[%c0_21, %c0_22] : memref<8x32xbf16, #tpu.memory_space<vmem>>, vector<8x8xbf16>
    %c0_23 = arith.constant 0 : index
    %c0_24 = arith.constant 0 : index
    %26 = vector.load %arg16[%c0_23, %c0_24] : memref<8x32xbf16, #tpu.memory_space<vmem>>, vector<8x8xbf16>
    %cst_25 = arith.constant dense<0.000000e+00> : vector<8x8xf32>
    %27 = tpu.matmul %24, %25, %cst_25 {dimension_numbers = #tpu.dot_dimension_numbers<[1], [1], [0], [0], [0, 0, 1, 0], [], []>} : vector<8x8xbf16>, vector<8x8xbf16>, vector<8x8xf32> -> vector<8x8xf32>
    %28 = arith.addf %27, %23 : vector<8x8xf32>
    %cst_26 = arith.constant dense<0xFF800000> : vector<8xf32>
    %29 = vector.multi_reduction <maximumf>, %28, %cst_26 [1] : vector<8x8xf32> to vector<8xf32>
    %30 = vector.shape_cast %29 : vector<8xf32> to vector<8x1xf32>
    %31 = vector.broadcast %30 : vector<8x1xf32> to vector<8x8xf32>
    %32 = arith.subf %28, %31 : vector<8x8xf32>
    %33 = math.exp %32 : vector<8x8xf32>
    %cst_27 = arith.constant dense<0.000000e+00> : vector<8xf32>
    %34 = vector.multi_reduction <add>, %33, %cst_27 [1] : vector<8x8xf32> to vector<8xf32>
    %35 = vector.shape_cast %34 : vector<8xf32> to vector<8x1xf32>
    %36 = tpu.reciprocal %35 {approx = true} : vector<8x1xf32> -> vector<8x1xf32>
    %37 = arith.truncf %33 : vector<8x8xf32> to vector<8x8xbf16>
    %cst_28 = arith.constant dense<0.000000e+00> : vector<8x8xf32>
    %38 = tpu.matmul %37, %26, %cst_28 {dimension_numbers = #tpu.dot_dimension_numbers<[1], [0], [0], [1], [0, 0, 1, 1], [], []>} : vector<8x8xbf16>, vector<8x8xbf16>, vector<8x8xf32> -> vector<8x8xf32>
    %39 = vector.broadcast %36 : vector<8x1xf32> to vector<8x8xf32>
    %40 = arith.mulf %38, %39 : vector<8x8xf32>
    %41 = arith.truncf %40 : vector<8x8xf32> to vector<8x8xbf16>
    %c0_29 = arith.constant 0 : index
    %c0_30 = arith.constant 0 : index
    %42 = vector.load %arg17[%c0_29, %c0_30] : memref<8x32xbf16, #tpu.memory_space<vmem>>, vector<8x8xbf16>
    tpu.vector_store %arg17[%c0_29, %c0_30], %41 {strides = array<i32>} : memref<8x32xbf16, #tpu.memory_space<vmem>>, vector<8x8xbf16>,
    %c0_31 = arith.constant 0 : index
    %c8 = arith.constant 8 : index
    %43 = vector.load %arg14[%c0_31, %c8] : memref<8x32xbf16, #tpu.memory_space<vmem>>, vector<8x8xbf16>
    %c0_32 = arith.constant 0 : index
    %c8_33 = arith.constant 8 : index
    %44 = vector.load %arg15[%c0_32, %c8_33] : memref<8x32xbf16, #tpu.memory_space<vmem>>, vector<8x8xbf16>
    %c0_34 = arith.constant 0 : index
    %c8_35 = arith.constant 8 : index
    %45 = vector.load %arg16[%c0_34, %c8_35] : memref<8x32xbf16, #tpu.memory_space<vmem>>, vector<8x8xbf16>
    %cst_36 = arith.constant dense<0.000000e+00> : vector<8x8xf32>
    %46 = tpu.matmul %43, %44, %cst_36 {dimension_numbers = #tpu.dot_dimension_numbers<[1], [1], [0], [0], [0, 0, 1, 0], [], []>} : vector<8x8xbf16>, vector<8x8xbf16>, vector<8x8xf32> -> vector<8x8xf32>
    %47 = arith.addf %46, %23 : vector<8x8xf32>
    %cst_37 = arith.constant dense<0xFF800000> : vector<8xf32>
    %48 = vector.multi_reduction <maximumf>, %47, %cst_37 [1] : vector<8x8xf32> to vector<8xf32>
    %49 = vector.shape_cast %48 : vector<8xf32> to vector<8x1xf32>
    %50 = vector.broadcast %49 : vector<8x1xf32> to vector<8x8xf32>
    %51 = arith.subf %47, %50 : vector<8x8xf32>
    %52 = math.exp %51 : vector<8x8xf32>
    %cst_38 = arith.constant dense<0.000000e+00> : vector<8xf32>
    %53 = vector.multi_reduction <add>, %52, %cst_38 [1] : vector<8x8xf32> to vector<8xf32>
    %54 = vector.shape_cast %53 : vector<8xf32> to vector<8x1xf32>
    %55 = tpu.reciprocal %54 {approx = true} : vector<8x1xf32> -> vector<8x1xf32>
    %56 = arith.truncf %52 : vector<8x8xf32> to vector<8x8xbf16>
    %cst_39 = arith.constant dense<0.000000e+00> : vector<8x8xf32>
    %57 = tpu.matmul %56, %45, %cst_39 {dimension_numbers = #tpu.dot_dimension_numbers<[1], [0], [0], [1], [0, 0, 1, 1], [], []>} : vector<8x8xbf16>, vector<8x8xbf16>, vector<8x8xf32> -> vector<8x8xf32>
    %58 = vector.broadcast %55 : vector<8x1xf32> to vector<8x8xf32>
    %59 = arith.mulf %57, %58 : vector<8x8xf32>
    %60 = arith.truncf %59 : vector<8x8xf32> to vector<8x8xbf16>
    %c0_40 = arith.constant 0 : index
    %c8_41 = arith.constant 8 : index
    %61 = vector.load %arg17[%c0_40, %c8_41] : memref<8x32xbf16, #tpu.memory_space<vmem>>, vector<8x8xbf16>
    tpu.vector_store %arg17[%c0_40, %c8_41], %60 {strides = array<i32>} : memref<8x32xbf16, #tpu.memory_space<vmem>>, vector<8x8xbf16>,
    %c0_42 = arith.constant 0 : index
    %c16 = arith.constant 16 : index
    %62 = vector.load %arg14[%c0_42, %c16] : memref<8x32xbf16, #tpu.memory_space<vmem>>, vector<8x8xbf16>
    %c0_43 = arith.constant 0 : index
    %c16_44 = arith.constant 16 : index
    %63 = vector.load %arg15[%c0_43, %c16_44] : memref<8x32xbf16, #tpu.memory_space<vmem>>, vector<8x8xbf16>
    %c0_45 = arith.constant 0 : index
    %c16_46 = arith.constant 16 : index
    %64 = vector.load %arg16[%c0_45, %c16_46] : memref<8x32xbf16, #tpu.memory_space<vmem>>, vector<8x8xbf16>
    %cst_47 = arith.constant dense<0.000000e+00> : vector<8x8xf32>
    %65 = tpu.matmul %62, %63, %cst_47 {dimension_numbers = #tpu.dot_dimension_numbers<[1], [1], [0], [0], [0, 0, 1, 0], [], []>} : vector<8x8xbf16>, vector<8x8xbf16>, vector<8x8xf32> -> vector<8x8xf32>
    %66 = arith.addf %65, %23 : vector<8x8xf32>
    %cst_48 = arith.constant dense<0xFF800000> : vector<8xf32>
    %67 = vector.multi_reduction <maximumf>, %66, %cst_48 [1] : vector<8x8xf32> to vector<8xf32>
    %68 = vector.shape_cast %67 : vector<8xf32> to vector<8x1xf32>
    %69 = vector.broadcast %68 : vector<8x1xf32> to vector<8x8xf32>
    %70 = arith.subf %66, %69 : vector<8x8xf32>
    %71 = math.exp %70 : vector<8x8xf32>
    %cst_49 = arith.constant dense<0.000000e+00> : vector<8xf32>
    %72 = vector.multi_reduction <add>, %71, %cst_49 [1] : vector<8x8xf32> to vector<8xf32>
    %73 = vector.shape_cast %72 : vector<8xf32> to vector<8x1xf32>
    %74 = tpu.reciprocal %73 {approx = true} : vector<8x1xf32> -> vector<8x1xf32>
    %75 = arith.truncf %71 : vector<8x8xf32> to vector<8x8xbf16>
    %cst_50 = arith.constant dense<0.000000e+00> : vector<8x8xf32>
    %76 = tpu.matmul %75, %64, %cst_50 {dimension_numbers = #tpu.dot_dimension_numbers<[1], [0], [0], [1], [0, 0, 1, 1], [], []>} : vector<8x8xbf16>, vector<8x8xbf16>, vector<8x8xf32> -> vector<8x8xf32>
    %77 = vector.broadcast %74 : vector<8x1xf32> to vector<8x8xf32>
    %78 = arith.mulf %76, %77 : vector<8x8xf32>
    %79 = arith.truncf %78 : vector<8x8xf32> to vector<8x8xbf16>
    %c0_51 = arith.constant 0 : index
    %c16_52 = arith.constant 16 : index
    %80 = vector.load %arg17[%c0_51, %c16_52] : memref<8x32xbf16, #tpu.memory_space<vmem>>, vector<8x8xbf16>
    tpu.vector_store %arg17[%c0_51, %c16_52], %79 {strides = array<i32>} : memref<8x32xbf16, #tpu.memory_space<vmem>>, vector<8x8xbf16>,
    %c0_53 = arith.constant 0 : index
    %c24 = arith.constant 24 : index
    %81 = vector.load %arg14[%c0_53, %c24] : memref<8x32xbf16, #tpu.memory_space<vmem>>, vector<8x8xbf16>
    %c0_54 = arith.constant 0 : index
    %c24_55 = arith.constant 24 : index
    %82 = vector.load %arg15[%c0_54, %c24_55] : memref<8x32xbf16, #tpu.memory_space<vmem>>, vector<8x8xbf16>
    %c0_56 = arith.constant 0 : index
    %c24_57 = arith.constant 24 : index
    %83 = vector.load %arg16[%c0_56, %c24_57] : memref<8x32xbf16, #tpu.memory_space<vmem>>, vector<8x8xbf16>
    %cst_58 = arith.constant dense<0.000000e+00> : vector<8x8xf32>
    %84 = tpu.matmul %81, %82, %cst_58 {dimension_numbers = #tpu.dot_dimension_numbers<[1], [1], [0], [0], [0, 0, 1, 0], [], []>} : vector<8x8xbf16>, vector<8x8xbf16>, vector<8x8xf32> -> vector<8x8xf32>
    %85 = arith.addf %84, %23 : vector<8x8xf32>
    %cst_59 = arith.constant dense<0xFF800000> : vector<8xf32>
    %86 = vector.multi_reduction <maximumf>, %85, %cst_59 [1] : vector<8x8xf32> to vector<8xf32>
    %87 = vector.shape_cast %86 : vector<8xf32> to vector<8x1xf32>
    %88 = vector.broadcast %87 : vector<8x1xf32> to vector<8x8xf32>
    %89 = arith.subf %85, %88 : vector<8x8xf32>
    %90 = math.exp %89 : vector<8x8xf32>
    %cst_60 = arith.constant dense<0.000000e+00> : vector<8xf32>
    %91 = vector.multi_reduction <add>, %90, %cst_60 [1] : vector<8x8xf32> to vector<8xf32>
    %92 = vector.shape_cast %91 : vector<8xf32> to vector<8x1xf32>
    %93 = tpu.reciprocal %92 {approx = true} : vector<8x1xf32> -> vector<8x1xf32>
    %94 = arith.truncf %90 : vector<8x8xf32> to vector<8x8xbf16>
    %cst_61 = arith.constant dense<0.000000e+00> : vector<8x8xf32>
    %95 = tpu.matmul %94, %83, %cst_61 {dimension_numbers = #tpu.dot_dimension_numbers<[1], [0], [0], [1], [0, 0, 1, 1], [], []>} : vector<8x8xbf16>, vector<8x8xbf16>, vector<8x8xf32> -> vector<8x8xf32>
    %96 = vector.broadcast %93 : vector<8x1xf32> to vector<8x8xf32>
    %97 = arith.mulf %95, %96 : vector<8x8xf32>
    %98 = arith.truncf %97 : vector<8x8xf32> to vector<8x8xbf16>
    %c0_62 = arith.constant 0 : index
    %c24_63 = arith.constant 24 : index
    %99 = vector.load %arg17[%c0_62, %c24_63] : memref<8x32xbf16, #tpu.memory_space<vmem>>, vector<8x8xbf16>
    tpu.vector_store %arg17[%c0_62, %c24_63], %98 {strides = array<i32>} : memref<8x32xbf16, #tpu.memory_space<vmem>>, vector<8x8xbf16>,
    %c0_64 = arith.constant 0 : index
    %c0_65 = arith.constant 0 : index
    %100 = vector.load %arg17[%c0_64, %c0_65] : memref<8x32xbf16, #tpu.memory_space<vmem>>, vector<8x32xbf16>
    %c0_66 = arith.constant 0 : index
    %c0_67 = arith.constant 0 : index
    %101 = vector.load %arg3[%c0_66, %c0_67] : memref<32x32xbf16, #tpu.memory_space<vmem>>, vector<32x32xbf16>
    %cst_68 = arith.constant dense<0.000000e+00> : vector<8x32xf32>
    %102 = tpu.matmul %100, %101, %cst_68 {dimension_numbers = #tpu.dot_dimension_numbers<[1], [0], [0], [1], [0, 0, 1, 1], [], []>} : vector<8x32xbf16>, vector<32x32xbf16>, vector<8x32xf32> -> vector<8x32xf32>
    %c0_69 = arith.constant 0 : index
    %c0_70 = arith.constant 0 : index
    %103 = vector.load %arg4[%c0_69, %c0_70] : memref<1x32xf32, #tpu.memory_space<vmem>>, vector<1x32xf32>
    %104 = vector.broadcast %103 : vector<1x32xf32> to vector<8x32xf32>
    %105 = arith.addf %102, %104 : vector<8x32xf32>
    %106 = arith.addf %1, %105 : vector<8x32xf32>
    %c0_71 = arith.constant 0 : index
    %c0_72 = arith.constant 0 : index
    %107 = vector.load %arg9[%c0_71, %c0_72] : memref<1x32xf32, #tpu.memory_space<vmem>>, vector<1x32xf32>
    %c0_73 = arith.constant 0 : index
    %c0_74 = arith.constant 0 : index
    %108 = vector.load %arg10[%c0_73, %c0_74] : memref<1x32xf32, #tpu.memory_space<vmem>>, vector<1x32xf32>
    %cst_75 = arith.constant dense<0.000000e+00> : vector<8xf32>
    %109 = vector.multi_reduction <add>, %106, %cst_75 [1] : vector<8x32xf32> to vector<8xf32>
    %110 = vector.shape_cast %109 : vector<8xf32> to vector<8x1xf32>
    %cst_76 = arith.constant 3.200000e+01 : f32
    %111 = vector.broadcast %cst_76 : f32 to vector<8x1xf32>
    %112 = arith.divf %110, %111 : vector<8x1xf32>
    %113 = vector.broadcast %112 : vector<8x1xf32> to vector<8x32xf32>
    %114 = arith.subf %106, %113 : vector<8x32xf32>
    %115 = arith.mulf %114, %114 : vector<8x32xf32>
    %cst_77 = arith.constant dense<0.000000e+00> : vector<8xf32>
    %116 = vector.multi_reduction <add>, %115, %cst_77 [1] : vector<8x32xf32> to vector<8xf32>
    %117 = vector.shape_cast %116 : vector<8xf32> to vector<8x1xf32>
    %cst_78 = arith.constant 3.200000e+01 : f32
    %118 = vector.broadcast %cst_78 : f32 to vector<8x1xf32>
    %119 = arith.divf %117, %118 : vector<8x1xf32>
    %120 = vector.broadcast %112 : vector<8x1xf32> to vector<8x32xf32>
    %121 = arith.subf %106, %120 : vector<8x32xf32>
    %cst_79 = arith.constant 9.99999974E-6 : f32
    %122 = vector.broadcast %cst_79 : f32 to vector<8x1xf32>
    %123 = arith.addf %119, %122 : vector<8x1xf32>
    %124 = math.rsqrt %123 : vector<8x1xf32>
    %125 = vector.broadcast %124 : vector<8x1xf32> to vector<8x32xf32>
    %126 = arith.mulf %121, %125 : vector<8x32xf32>
    %127 = vector.broadcast %107 : vector<1x32xf32> to vector<8x32xf32>
    %128 = arith.mulf %126, %127 : vector<8x32xf32>
    %129 = vector.broadcast %108 : vector<1x32xf32> to vector<8x32xf32>
    %130 = arith.addf %128, %129 : vector<8x32xf32>
    %131 = arith.truncf %130 : vector<8x32xf32> to vector<8x32xbf16>
    %cst_80 = arith.constant 0.000000e+00 : f32
    %132 = vector.broadcast %cst_80 : f32 to vector<8x32xf32>
    %c0_81 = arith.constant 0 : index
    %c0_82 = arith.constant 0 : index
    %133 = vector.load %arg5[%c0_81, %c0_82] : memref<32x128xbf16, #tpu.memory_space<vmem>>, vector<32x128xbf16>
    %cst_83 = arith.constant dense<0.000000e+00> : vector<8x128xf32>
    %134 = tpu.matmul %131, %133, %cst_83 {dimension_numbers = #tpu.dot_dimension_numbers<[1], [0], [0], [1], [0, 0, 1, 1], [], []>} : vector<8x32xbf16>, vector<32x128xbf16>, vector<8x128xf32> -> vector<8x128xf32>
    %c0_84 = arith.constant 0 : index
    %c0_85 = arith.constant 0 : index
    %135 = vector.load %arg6[%c0_84, %c0_85] : memref<1x128xf32, #tpu.memory_space<vmem>>, vector<1x128xf32>
    %136 = vector.broadcast %135 : vector<1x128xf32> to vector<8x128xf32>
    %137 = arith.addf %134, %136 : vector<8x128xf32>
    %cst_86 = arith.constant 0.000000e+00 : f32
    %138 = vector.broadcast %cst_86 : f32 to vector<8x128xf32>
    %139 = arith.maximumf %137, %138 : vector<8x128xf32>
    %140 = arith.truncf %139 : vector<8x128xf32> to vector<8x128xbf16>
    %c0_87 = arith.constant 0 : index
    %c0_88 = arith.constant 0 : index
    %141 = vector.load %arg7[%c0_87, %c0_88] : memref<128x32xbf16, #tpu.memory_space<vmem>>, vector<128x32xbf16>
    %cst_89 = arith.constant dense<0.000000e+00> : vector<8x32xf32>
    %142 = tpu.matmul %140, %141, %cst_89 {dimension_numbers = #tpu.dot_dimension_numbers<[1], [0], [0], [1], [0, 0, 1, 1], [], []>} : vector<8x128xbf16>, vector<128x32xbf16>, vector<8x32xf32> -> vector<8x32xf32>
    %143 = arith.addf %132, %142 : vector<8x32xf32>
    %c0_90 = arith.constant 0 : index
    %c0_91 = arith.constant 0 : index
    %144 = vector.load %arg8[%c0_90, %c0_91] : memref<1x32xf32, #tpu.memory_space<vmem>>, vector<1x32xf32>
    %145 = vector.broadcast %144 : vector<1x32xf32> to vector<8x32xf32>
    %146 = arith.addf %143, %145 : vector<8x32xf32>
    %147 = arith.addf %130, %146 : vector<8x32xf32>
    %c0_92 = arith.constant 0 : index
    %c0_93 = arith.constant 0 : index
    %148 = vector.load %arg11[%c0_92, %c0_93] : memref<1x32xf32, #tpu.memory_space<vmem>>, vector<1x32xf32>
    %c0_94 = arith.constant 0 : index
    %c0_95 = arith.constant 0 : index
    %149 = vector.load %arg12[%c0_94, %c0_95] : memref<1x32xf32, #tpu.memory_space<vmem>>, vector<1x32xf32>
    %cst_96 = arith.constant dense<0.000000e+00> : vector<8xf32>
    %150 = vector.multi_reduction <add>, %147, %cst_96 [1] : vector<8x32xf32> to vector<8xf32>
    %151 = vector.shape_cast %150 : vector<8xf32> to vector<8x1xf32>
    %cst_97 = arith.constant 3.200000e+01 : f32
    %152 = vector.broadcast %cst_97 : f32 to vector<8x1xf32>
    %153 = arith.divf %151, %152 : vector<8x1xf32>
    %154 = vector.broadcast %153 : vector<8x1xf32> to vector<8x32xf32>
    %155 = arith.subf %147, %154 : vector<8x32xf32>
    %156 = arith.mulf %155, %155 : vector<8x32xf32>
    %cst_98 = arith.constant dense<0.000000e+00> : vector<8xf32>
    %157 = vector.multi_reduction <add>, %156, %cst_98 [1] : vector<8x32xf32> to vector<8xf32>
    %158 = vector.shape_cast %157 : vector<8xf32> to vector<8x1xf32>
    %cst_99 = arith.constant 3.200000e+01 : f32
    %159 = vector.broadcast %cst_99 : f32 to vector<8x1xf32>
    %160 = arith.divf %158, %159 : vector<8x1xf32>
    %161 = vector.broadcast %153 : vector<8x1xf32> to vector<8x32xf32>
    %162 = arith.subf %147, %161 : vector<8x32xf32>
    %cst_100 = arith.constant 9.99999974E-6 : f32
    %163 = vector.broadcast %cst_100 : f32 to vector<8x1xf32>
    %164 = arith.addf %160, %163 : vector<8x1xf32>
    %165 = math.rsqrt %164 : vector<8x1xf32>
    %166 = vector.broadcast %165 : vector<8x1xf32> to vector<8x32xf32>
    %167 = arith.mulf %162, %166 : vector<8x32xf32>
    %168 = vector.broadcast %148 : vector<1x32xf32> to vector<8x32xf32>
    %169 = arith.mulf %167, %168 : vector<8x32xf32>
    %170 = vector.broadcast %149 : vector<1x32xf32> to vector<8x32xf32>
    %171 = arith.addf %169, %170 : vector<8x32xf32>
    %c0_101 = arith.constant 0 : index
    %c0_102 = arith.constant 0 : index
    %c0_103 = arith.constant 0 : index
    %172 = vector.load %arg13[%c0_101, %c0_102, %c0_103] : memref<1x8x32xf32, #tpu.memory_space<vmem>>, vector<1x8x32xf32>
    %173 = vector.shape_cast %172 : vector<1x8x32xf32> to vector<8x32xf32>
    %174 = vector.shape_cast %171 : vector<8x32xf32> to vector<1x8x32xf32>
    tpu.vector_store %arg13[%c0_101, %c0_102, %c0_103], %174 {strides = array<i32>} : memref<1x8x32xf32, #tpu.memory_space<vmem>>, vector<1x8x32xf32>,
    return
  }
  func.func @transform_0(%arg0: i32) -> (i32, i32, i32) {
    %c0_i32 = arith.constant 0 : i32
    %c0_i32_0 = arith.constant 0 : i32
    %c0_i32_1 = arith.constant 0 : i32
    return %arg0, %c0_i32, %c0_i32_0 : i32, i32, i32
  }
  func.func @transform_1(%arg0: i32) -> (i32, i32, i32) {
    %c0_i32 = arith.constant 0 : i32
    %c0_i32_0 = arith.constant 0 : i32
    %c0_i32_1 = arith.constant 0 : i32
    %c0_i32_2 = arith.constant 0 : i32
    return %c0_i32, %c0_i32_0, %c0_i32_1 : i32, i32, i32
  }
  func.func @transform_2(%arg0: i32) -> (i32, i32) {
    %c0_i32 = arith.constant 0 : i32
    %c0_i32_0 = arith.constant 0 : i32
    %c0_i32_1 = arith.constant 0 : i32
    return %c0_i32, %c0_i32_0 : i32, i32
  }
  func.func @transform_3(%arg0: i32) -> (i32, i32) {
    %c0_i32 = arith.constant 0 : i32
    %c0_i32_0 = arith.constant 0 : i32
    %c0_i32_1 = arith.constant 0 : i32
    return %c0_i32, %c0_i32_0 : i32, i32
  }
  func.func @transform_4(%arg0: i32) -> (i32, i32) {
    %c0_i32 = arith.constant 0 : i32
    %c0_i32_0 = arith.constant 0 : i32
    %c0_i32_1 = arith.constant 0 : i32
    return %c0_i32, %c0_i32_0 : i32, i32
  }
  func.func @transform_5(%arg0: i32) -> (i32, i32) {
    %c0_i32 = arith.constant 0 : i32
    %c0_i32_0 = arith.constant 0 : i32
    %c0_i32_1 = arith.constant 0 : i32
    return %c0_i32, %c0_i32_0 : i32, i32
  }
  func.func @transform_6(%arg0: i32) -> (i32, i32) {
    %c0_i32 = arith.constant 0 : i32
    %c0_i32_0 = arith.constant 0 : i32
    %c0_i32_1 = arith.constant 0 : i32
    return %c0_i32, %c0_i32_0 : i32, i32
  }
  func.func @transform_7(%arg0: i32) -> (i32, i32) {
    %c0_i32 = arith.constant 0 : i32
    %c0_i32_0 = arith.constant 0 : i32
    %c0_i32_1 = arith.constant 0 : i32
    return %c0_i32, %c0_i32_0 : i32, i32
  }
  func.func @transform_8(%arg0: i32) -> (i32, i32) {
    %c0_i32 = arith.constant 0 : i32
    %c0_i32_0 = arith.constant 0 : i32
    %c0_i32_1 = arith.constant 0 : i32
    return %c0_i32, %c0_i32_0 : i32, i32
  }
  func.func @transform_9(%arg0: i32) -> (i32, i32) {
    %c0_i32 = arith.constant 0 : i32
    %c0_i32_0 = arith.constant 0 : i32
    %c0_i32_1 = arith.constant 0 : i32
    return %c0_i32, %c0_i32_0 : i32, i32
  }
  func.func @transform_10(%arg0: i32) -> (i32, i32) {
    %c0_i32 = arith.constant 0 : i32
    %c0_i32_0 = arith.constant 0 : i32
    %c0_i32_1 = arith.constant 0 : i32
    return %c0_i32, %c0_i32_0 : i32, i32
  }
  func.func @transform_11(%arg0: i32) -> (i32, i32) {
    %c0_i32 = arith.constant 0 : i32
    %c0_i32_0 = arith.constant 0 : i32
    %c0_i32_1 = arith.constant 0 : i32
    return %c0_i32, %c0_i32_0 : i32, i32
  }
  func.func @transform_12(%arg0: i32) -> (i32, i32, i32) {
    %c0_i32 = arith.constant 0 : i32
    %c0_i32_0 = arith.constant 0 : i32
    %c0_i32_1 = arith.constant 0 : i32
    return %arg0, %c0_i32, %c0_i32_0 : i32, i32, i32
  }
}

</mosaic_0001>

<llo_original>
// kernel: tpu_custom_call.1
$region0: #{tpu_custom_call.1}
  #allocation0 [shape = 'u32[]', space=smem, size = 0x4, offset = 0x4, fixed_abs, tag = 'smem constant byte address 0x4 - core index']
  #allocation1 [shape = 'u32[144,128]{1,0:T(1,128)}', space=vmem, size = 0x12000, scoped, tag = 'internal scratch']
  #allocation2 [shape = 'bf16[8,32]{1,0:T(8,128)(2,1)}', space=vmem, size = 0x800, scoped, tag = 'scratch operand']
  #allocation3 [shape = 'bf16[8,32]{1,0:T(8,128)(2,1)}', space=vmem, size = 0x800, scoped, tag = 'scratch operand']
  #allocation4 [shape = 'bf16[8,32]{1,0:T(8,128)(2,1)}', space=vmem, size = 0x800, scoped, tag = 'scratch operand']
  #allocation5 [shape = 'bf16[8,32]{1,0:T(8,128)(2,1)}', space=vmem, size = 0x800, scoped, tag = 'scratch operand']
  %s0 = inlined_call_operand.vmem [shape: f32[2,8,32], index: 0, kind: input, shape index: {}]
  %s1 = inlined_call_operand.vmem [shape: bf16[3,32,32], index: 1, kind: input, shape index: {}]
  %s2 = inlined_call_operand.vmem [shape: bf16[32,32], index: 2, kind: input, shape index: {}]
  %s3 = inlined_call_operand.vmem [shape: f32[1,32], index: 3, kind: input, shape index: {}]
  %s4 = inlined_call_operand.hbm [shape: bf16[32,128], index: 4, kind: input, shape index: {}]
  %s5 = inlined_call_operand.vmem [shape: f32[1,128], index: 5, kind: input, shape index: {}]
  %s6 = inlined_call_operand.vmem [shape: bf16[128,32], index: 6, kind: input, shape index: {}]
  %s7 = inlined_call_operand.vmem [shape: f32[1,32], index: 7, kind: input, shape index: {}]
  %s8 = inlined_call_operand.vmem [shape: f32[1,32], index: 8, kind: input, shape index: {}]
  %s9 = inlined_call_operand.vmem [shape: f32[1,32], index: 9, kind: input, shape index: {}]
  %s10 = inlined_call_operand.vmem [shape: f32[1,32], index: 10, kind: input, shape index: {}]
  %s11 = inlined_call_operand.vmem [shape: f32[1,32], index: 11, kind: input, shape index: {}]
  %s12 = inlined_call_operand.hbm [shape: f32[2,8,32], index: 12, kind: output, shape index: {}]
  %s13 = sld [smem:[#allocation0]]
  $region85: #{tpu_custom_call.1} parent=0
    _
  %s15 = ssub.s32 1, %s13
  %s16 = scalar_select 0, %s15, %s13
  $region1: #{tpu_custom_call.1} parent=0
    #allocation6 [shape = 'u8[8192]{0}', space=vmem, size = 0x2000, scoped, tag = 'input window, operand 4, single buffered']
    #allocation7 [shape = 's32[2]{0}', space=sflag, size = 0x8, scoped, tag = 'scoped memory for tpu_custom_call.1']
    #allocation8 [shape = 's32[2]{0}', space=sflag, size = 0x8, scoped, tag = 'scoped memory for tpu_custom_call.1']
    #allocation9 [shape = 'u8[8192]{0}', space=vmem, size = 0x2000, scoped, tag = 'output window, operand 0']
    %17 = vsyncpa [#allocation7], 0
    %18 = vsyncpa [#allocation8], 0
    %s19 = scalar_lea.sflag [#allocation8], 1
    %20 = vsyncpa %s19, 0
    loop: start=0, step=1, limit=4
    $region2: #{tpu_custom_call.1} parent=1 // loop_pre_header
      _
    $region3: #{tpu_custom_call.1} parent=1 // loop_header
      %s22 = sphi 0, %s26
      %p23 = scmp.ge.s32.totalorder %s22, 4
      %s32 = sphi 0, %s34
      %s35 = sphi 0, %s32
      %s36 = sphi 0, %s35
      %s52 = sphi 0, %s36
      %s56 = sphi 0, %s56
      %s58 = sphi 0, %s56
      %s59 = sphi 0, %s58
      %s73 = sphi 0, %s59
      %s77 = sphi 0, %s77
      %s79 = sphi 0, %s77
      %s80 = sphi 0, %s79
      %s94 = sphi 0, %s80
      %s98 = sphi 0, %s98
      %s100 = sphi 0, %s98
      %s101 = sphi 0, %s100
      %s115 = sphi 0, %s101
      %s119 = sphi 0, %s119
      %s121 = sphi 0, %s119
      %s122 = sphi 0, %s121
      %s136 = sphi 0, %s122
      %s140 = sphi 0, %s140
      %s142 = sphi 0, %s140
      %s143 = sphi 0, %s142
      %s157 = sphi 0, %s143
      %s161 = sphi 0, %s161
      %s163 = sphi 0, %s161
      %s164 = sphi 0, %s163
      %s178 = sphi 0, %s164
      %s182 = sphi 0, %s182
      %s184 = sphi 0, %s182
      %s185 = sphi 0, %s184
      %s199 = sphi 0, %s185
      %s203 = sphi 0, %s203
      %s205 = sphi 0, %s203
      %s206 = sphi 0, %s205
      %s220 = sphi 0, %s206
      %s224 = sphi 0, %s224
      %s226 = sphi 0, %s224
      %s227 = sphi 0, %s226
      %s241 = sphi 0, %s227
      %s245 = sphi 0, %s245
      %s247 = sphi 0, %s245
      %s248 = sphi 0, %s247
      %s262 = sphi 0, %s248
      %s266 = sphi 0, %s266
      %s268 = sphi 0, %s266
      %s269 = sphi 0, %s268
      %s283 = sphi 0, %s269
      %s289 = sphi 0, %s291
      %s292 = sphi 0, %s289
      %s293 = sphi 0, %s292
      %s309 = sphi 0, %s293
    $region4: #{tpu_custom_call.1} parent=1 // loop_header_branch
      %25 = sbr.rel (%p23) target = $region8
    $region5: #{tpu_custom_call.1} parent=1 // loop_body
      %s27 = ssub.s32 %s22, 1
      %s28 = ssub.s32 %s22, 2
      %s29 = sadd.s32 %s22, 1
      %s30 = ssub.s32 %s22, %s29
      %p31 = scmp.eq.s32.totalorder %s30, 0
      %s33 = sadd.s32 %s32, 1
      %s34 = scalar_select %p31, %s32, %s33
      %p37 = pneg %p31
      %p38 = scmp.eq.s32.totalorder %s22, 1
      %p39 = por %p37, %p38
      %p40 = scmp.ne.s32.totalorder %s32, %s35
      %p41 = scmp.eq.s32.totalorder %s22, 0
      %p42 = por %p40, %p41
      %p43 = scmp.ne.s32.totalorder %s32, %s35
      %p44 = scmp.eq.s32.totalorder %s27, 1
      %p45 = por %p43, %p44
      %p46 = scmp.ne.s32.totalorder %s35, %s36
      %p47 = scmp.eq.s32.totalorder %s27, 0
      %p48 = por %p46, %p47
      %p49 = scmp.ne.s32.totalorder %s35, %s36
      %p50 = scmp.eq.s32.totalorder %s28, 1
      %p51 = por %p49, %p50
      %p53 = scmp.ne.s32.totalorder %s36, %s52
      %p54 = scmp.eq.s32.totalorder %s28, 0
      %p55 = por %p53, %p54
      %s57 = sadd.s32 %s56, 1
      %p60 = scmp.eq.s32.totalorder %s22, 1
      %p61 = scmp.ne.s32.totalorder %s56, %s58
      %p62 = scmp.eq.s32.totalorder %s22, 0
      %p63 = por %p61, %p62
      %p64 = scmp.ne.s32.totalorder %s56, %s58
      %p65 = scmp.eq.s32.totalorder %s27, 1
      %p66 = por %p64, %p65
      %p67 = scmp.ne.s32.totalorder %s58, %s59
      %p68 = scmp.eq.s32.totalorder %s27, 0
      %p69 = por %p67, %p68
      %p70 = scmp.ne.s32.totalorder %s58, %s59
      %p71 = scmp.eq.s32.totalorder %s28, 1
      %p72 = por %p70, %p71
      %p74 = scmp.ne.s32.totalorder %s59, %s73
      %p75 = scmp.eq.s32.totalorder %s28, 0
      %p76 = por %p74, %p75
      %s78 = sadd.s32 %s77, 1
      %p81 = scmp.eq.s32.totalorder %s22, 1
      %p82 = scmp.ne.s32.totalorder %s77, %s79
      %p83 = scmp.eq.s32.totalorder %s22, 0
      %p84 = por %p82, %p83
      %p85 = scmp.ne.s32.totalorder %s77, %s79
      %p86 = scmp.eq.s32.totalorder %s27, 1
      %p87 = por %p85, %p86
      %p88 = scmp.ne.s32.totalorder %s79, %s80
      %p89 = scmp.eq.s32.totalorder %s27, 0
      %p90 = por %p88, %p89
      %p91 = scmp.ne.s32.totalorder %s79, %s80
      %p92 = scmp.eq.s32.totalorder %s28, 1
      %p93 = por %p91, %p92
      %p95 = scmp.ne.s32.totalorder %s80, %s94
      %p96 = scmp.eq.s32.totalorder %s28, 0
      %p97 = por %p95, %p96
      %s99 = sadd.s32 %s98, 1
      %p102 = scmp.eq.s32.totalorder %s22, 1
      %p103 = scmp.ne.s32.totalorder %s98, %s100
      %p104 = scmp.eq.s32.totalorder %s22, 0
      %p105 = por %p103, %p104
      %p106 = scmp.ne.s32.totalorder %s98, %s100
      %p107 = scmp.eq.s32.totalorder %s27, 1
      %p108 = por %p106, %p107
      %p109 = scmp.ne.s32.totalorder %s100, %s101
      %p110 = scmp.eq.s32.totalorder %s27, 0
      %p111 = por %p109, %p110
      %p112 = scmp.ne.s32.totalorder %s100, %s101
      %p113 = scmp.eq.s32.totalorder %s28, 1
      %p114 = por %p112, %p113
      %p116 = scmp.ne.s32.totalorder %s101, %s115
      %p117 = scmp.eq.s32.totalorder %s28, 0
      %p118 = por %p116, %p117
      %s120 = sadd.s32 %s119, 1
      %p123 = scmp.eq.s32.totalorder %s22, 1
      %p124 = scmp.ne.s32.totalorder %s119, %s121
      %p125 = scmp.eq.s32.totalorder %s22, 0
      %p126 = por %p124, %p125
      %p127 = scmp.ne.s32.totalorder %s119, %s121
      %p128 = scmp.eq.s32.totalorder %s27, 1
      %p129 = por %p127, %p128
      %p130 = scmp.ne.s32.totalorder %s121, %s122
      %p131 = scmp.eq.s32.totalorder %s27, 0
      %p132 = por %p130, %p131
      %p133 = scmp.ne.s32.totalorder %s121, %s122
      %p134 = scmp.eq.s32.totalorder %s28, 1
      %p135 = por %p133, %p134
      %p137 = scmp.ne.s32.totalorder %s122, %s136
      %p138 = scmp.eq.s32.totalorder %s28, 0
      %p139 = por %p137, %p138
      %s141 = sadd.s32 %s140, 1
      %p144 = scmp.eq.s32.totalorder %s22, 1
      %p145 = scmp.ne.s32.totalorder %s140, %s142
      %p146 = scmp.eq.s32.totalorder %s22, 0
      %p147 = por %p145, %p146
      %p148 = scmp.ne.s32.totalorder %s140, %s142
      %p149 = scmp.eq.s32.totalorder %s27, 1
      %p150 = por %p148, %p149
      %p151 = scmp.ne.s32.totalorder %s142, %s143
      %p152 = scmp.eq.s32.totalorder %s27, 0
      %p153 = por %p151, %p152
      %p154 = scmp.ne.s32.totalorder %s142, %s143
      %p155 = scmp.eq.s32.totalorder %s28, 1
      %p156 = por %p154, %p155
      %p158 = scmp.ne.s32.totalorder %s143, %s157
      %p159 = scmp.eq.s32.totalorder %s28, 0
      %p160 = por %p158, %p159
      %s162 = sadd.s32 %s161, 1
      %p165 = scmp.eq.s32.totalorder %s22, 1
      %p166 = scmp.ne.s32.totalorder %s161, %s163
      %p167 = scmp.eq.s32.totalorder %s22, 0
      %p168 = por %p166, %p167
      %p169 = scmp.ne.s32.totalorder %s161, %s163
      %p170 = scmp.eq.s32.totalorder %s27, 1
      %p171 = por %p169, %p170
      %p172 = scmp.ne.s32.totalorder %s163, %s164
      %p173 = scmp.eq.s32.totalorder %s27, 0
      %p174 = por %p172, %p173
      %p175 = scmp.ne.s32.totalorder %s163, %s164
      %p176 = scmp.eq.s32.totalorder %s28, 1
      %p177 = por %p175, %p176
      %p179 = scmp.ne.s32.totalorder %s164, %s178
      %p180 = scmp.eq.s32.totalorder %s28, 0
      %p181 = por %p179, %p180
      %s183 = sadd.s32 %s182, 1
      %p186 = scmp.eq.s32.totalorder %s22, 1
      %p187 = scmp.ne.s32.totalorder %s182, %s184
      %p188 = scmp.eq.s32.totalorder %s22, 0
      %p189 = por %p187, %p188
      %p190 = scmp.ne.s32.totalorder %s182, %s184
      %p191 = scmp.eq.s32.totalorder %s27, 1
      %p192 = por %p190, %p191
      %p193 = scmp.ne.s32.totalorder %s184, %s185
      %p194 = scmp.eq.s32.totalorder %s27, 0
      %p195 = por %p193, %p194
      %p196 = scmp.ne.s32.totalorder %s184, %s185
      %p197 = scmp.eq.s32.totalorder %s28, 1
      %p198 = por %p196, %p197
      %p200 = scmp.ne.s32.totalorder %s185, %s199
      %p201 = scmp.eq.s32.totalorder %s28, 0
      %p202 = por %p200, %p201
      %s204 = sadd.s32 %s203, 1
      %p207 = scmp.eq.s32.totalorder %s22, 1
      %p208 = scmp.ne.s32.totalorder %s203, %s205
      %p209 = scmp.eq.s32.totalorder %s22, 0
      %p210 = por %p208, %p209
      %p211 = scmp.ne.s32.totalorder %s203, %s205
      %p212 = scmp.eq.s32.totalorder %s27, 1
      %p213 = por %p211, %p212
      %p214 = scmp.ne.s32.totalorder %s205, %s206
      %p215 = scmp.eq.s32.totalorder %s27, 0
      %p216 = por %p214, %p215
      %p217 = scmp.ne.s32.totalorder %s205, %s206
      %p218 = scmp.eq.s32.totalorder %s28, 1
      %p219 = por %p217, %p218
      %p221 = scmp.ne.s32.totalorder %s206, %s220
      %p222 = scmp.eq.s32.totalorder %s28, 0
      %p223 = por %p221, %p222
      %s225 = sadd.s32 %s224, 1
      %p228 = scmp.eq.s32.totalorder %s22, 1
      %p229 = scmp.ne.s32.totalorder %s224, %s226
      %p230 = scmp.eq.s32.totalorder %s22, 0
      %p231 = por %p229, %p230
      %p232 = scmp.ne.s32.totalorder %s224, %s226
      %p233 = scmp.eq.s32.totalorder %s27, 1
      %p234 = por %p232, %p233
      %p235 = scmp.ne.s32.totalorder %s226, %s227
      %p236 = scmp.eq.s32.totalorder %s27, 0
      %p237 = por %p235, %p236
      %p238 = scmp.ne.s32.totalorder %s226, %s227
      %p239 = scmp.eq.s32.totalorder %s28, 1
      %p240 = por %p238, %p239
      %p242 = scmp.ne.s32.totalorder %s227, %s241
      %p243 = scmp.eq.s32.totalorder %s28, 0
      %p244 = por %p242, %p243
      %s246 = sadd.s32 %s245, 1
      %p249 = scmp.eq.s32.totalorder %s22, 1
      %p250 = scmp.ne.s32.totalorder %s245, %s247
      %p251 = scmp.eq.s32.totalorder %s22, 0
      %p252 = por %p250, %p251
      %p253 = scmp.ne.s32.totalorder %s245, %s247
      %p254 = scmp.eq.s32.totalorder %s27, 1
      %p255 = por %p253, %p254
      %p256 = scmp.ne.s32.totalorder %s247, %s248
      %p257 = scmp.eq.s32.totalorder %s27, 0
      %p258 = por %p256, %p257
      %p259 = scmp.ne.s32.totalorder %s247, %s248
      %p260 = scmp.eq.s32.totalorder %s28, 1
      %p261 = por %p259, %p260
      %p263 = scmp.ne.s32.totalorder %s248, %s262
      %p264 = scmp.eq.s32.totalorder %s28, 0
      %p265 = por %p263, %p264
      %s267 = sadd.s32 %s266, 1
      %p270 = scmp.eq.s32.totalorder %s22, 1
      %p271 = scmp.ne.s32.totalorder %s266, %s268
      %p272 = scmp.eq.s32.totalorder %s22, 0
      %p273 = por %p271, %p272
      %p274 = scmp.ne.s32.totalorder %s266, %s268
      %p275 = scmp.eq.s32.totalorder %s27, 1
      %p276 = por %p274, %p275
      %p277 = scmp.ne.s32.totalorder %s268, %s269
      %p278 = scmp.eq.s32.totalorder %s27, 0
      %p279 = por %p277, %p278
      %p280 = scmp.ne.s32.totalorder %s268, %s269
      %p281 = scmp.eq.s32.totalorder %s28, 1
      %p282 = por %p280, %p281
      %p284 = scmp.ne.s32.totalorder %s269, %s283
      %p285 = scmp.eq.s32.totalorder %s28, 0
      %p286 = por %p284, %p285
      %s287 = ssub.s32 %s22, %s29
      %p288 = scmp.eq.s32.totalorder %s287, 0
      %s290 = sadd.s32 %s289, 1
      %s291 = scalar_select %p288, %s289, %s290
      %p294 = pneg %p288
      %p295 = scmp.eq.s32.totalorder %s22, 1
      %p296 = por %p294, %p295
      %p297 = scmp.ne.s32.totalorder %s289, %s292
      %p298 = scmp.eq.s32.totalorder %s22, 0
      %p299 = por %p297, %p298
      %p300 = scmp.ne.s32.totalorder %s289, %s292
      %p301 = scmp.eq.s32.totalorder %s27, 1
      %p302 = por %p300, %p301
      %p303 = scmp.ne.s32.totalorder %s292, %s293
      %p304 = scmp.eq.s32.totalorder %s27, 0
      %p305 = por %p303, %p304
      %p306 = scmp.ne.s32.totalorder %s292, %s293
      %p307 = scmp.eq.s32.totalorder %s28, 1
      %p308 = por %p306, %p307
      %p310 = scmp.ne.s32.totalorder %s293, %s309
      %p311 = scmp.eq.s32.totalorder %s28, 0
      %p312 = por %p310, %p311
      %p313 = scmp.le.s32.totalorder 1, %s22
      %p314 = scmp.lt.s32.totalorder %s22, 3
      %p315 = pnand %p313, %p314
      %p316 = pneg %p315
      // Predicated region
      $region9: #{tpu_custom_call.1} parent=5 // pred_check
        _
      $region10: #{tpu_custom_call.1} parent=5 // pred_check_branch
        %318 = sbr.rel (%p315) target = $region12
      $region11: #{tpu_custom_call.1} parent=5 // pred_region
        %s319 = ssub.s32 %s22, 1
        // Predicated region
        $region13: #{tpu_custom_call.1} parent=11 // pred_check
          %p320 = pneg %p69
        $region14: #{tpu_custom_call.1} parent=11 // pred_check_branch
          %322 = sbr.rel (%p320) target = $region16
        $region15: #{tpu_custom_call.1} parent=11 // pred_region
          _
        $region16: #{tpu_custom_call.1} parent=11 // pred_fallthru
          _
        // Predicated region
        $region17: #{tpu_custom_call.1} parent=11 // pred_check
          %p323 = pneg %p90
        $region18: #{tpu_custom_call.1} parent=11 // pred_check_branch
          %325 = sbr.rel (%p323) target = $region20
        $region19: #{tpu_custom_call.1} parent=11 // pred_region
          _
        $region20: #{tpu_custom_call.1} parent=11 // pred_fallthru
          _
        // Predicated region
        $region21: #{tpu_custom_call.1} parent=11 // pred_check
          %p326 = pneg %p111
        $region22: #{tpu_custom_call.1} parent=11 // pred_check_branch
          %328 = sbr.rel (%p326) target = $region24
        $region23: #{tpu_custom_call.1} parent=11 // pred_region
          _
        $region24: #{tpu_custom_call.1} parent=11 // pred_fallthru
          _
        // Predicated region
        $region25: #{tpu_custom_call.1} parent=11 // pred_check
          %p329 = pneg %p132
        $region26: #{tpu_custom_call.1} parent=11 // pred_check_branch
          %331 = sbr.rel (%p329) target = $region28
        $region27: #{tpu_custom_call.1} parent=11 // pred_region
          %s333 = ssub.s32 256, 256
          %334 = vsyncadd [#allocation7], %s333
          %s335 = sshll.u32 [#allocation6], 4
          %s336 = int_to_ptr.vmem [resolvable:$true] %s335
          %341 = dma.hbm_to_vmem [thread:$0]  %s4, 256, %s336, [#allocation7], 64, 64, 4
        $region28: #{tpu_custom_call.1} parent=11 // pred_fallthru
          _
        // Predicated region
        $region29: #{tpu_custom_call.1} parent=11 // pred_check
          %p342 = pneg %p153
        $region30: #{tpu_custom_call.1} parent=11 // pred_check_branch
          %344 = sbr.rel (%p342) target = $region32
        $region31: #{tpu_custom_call.1} parent=11 // pred_region
          _
        $region32: #{tpu_custom_call.1} parent=11 // pred_fallthru
          _
        // Predicated region
        $region33: #{tpu_custom_call.1} parent=11 // pred_check
          %p345 = pneg %p174
        $region34: #{tpu_custom_call.1} parent=11 // pred_check_branch
          %347 = sbr.rel (%p345) target = $region36
        $region35: #{tpu_custom_call.1} parent=11 // pred_region
          _
        $region36: #{tpu_custom_call.1} parent=11 // pred_fallthru
          _
        // Predicated region
        $region37: #{tpu_custom_call.1} parent=11 // pred_check
          %p348 = pneg %p195
        $region38: #{tpu_custom_call.1} parent=11 // pred_check_branch
          %350 = sbr.rel (%p348) target = $region40
        $region39: #{tpu_custom_call.1} parent=11 // pred_region
          _
        $region40: #{tpu_custom_call.1} parent=11 // pred_fallthru
          _
        // Predicated region
        $region41: #{tpu_custom_call.1} parent=11 // pred_check
          %p351 = pneg %p216
        $region42: #{tpu_custom_call.1} parent=11 // pred_check_branch
          %353 = sbr.rel (%p351) target = $region44
        $region43: #{tpu_custom_call.1} parent=11 // pred_region
          _
        $region44: #{tpu_custom_call.1} parent=11 // pred_fallthru
          _
        // Predicated region
        $region45: #{tpu_custom_call.1} parent=11 // pred_check
          %p354 = pneg %p237
        $region46: #{tpu_custom_call.1} parent=11 // pred_check_branch
          %356 = sbr.rel (%p354) target = $region48
        $region47: #{tpu_custom_call.1} parent=11 // pred_region
          _
        $region48: #{tpu_custom_call.1} parent=11 // pred_fallthru
          _
        // Predicated region
        $region49: #{tpu_custom_call.1} parent=11 // pred_check
          %p357 = pneg %p258
        $region50: #{tpu_custom_call.1} parent=11 // pred_check_branch
          %359 = sbr.rel (%p357) target = $region52
        $region51: #{tpu_custom_call.1} parent=11 // pred_region
          _
        $region52: #{tpu_custom_call.1} parent=11 // pred_fallthru
          _
        // Predicated region
        $region53: #{tpu_custom_call.1} parent=11 // pred_check
          %p360 = pneg %p279
        $region54: #{tpu_custom_call.1} parent=11 // pred_check_branch
          %362 = sbr.rel (%p360) target = $region56
        $region55: #{tpu_custom_call.1} parent=11 // pred_region
          _
        $region56: #{tpu_custom_call.1} parent=11 // pred_fallthru
          _
      $region12: #{tpu_custom_call.1} parent=5 // pred_fallthru
        _
      %p363 = scmp.lt.s32.totalorder %s22, 2
      // Predicated region
      $region57: #{tpu_custom_call.1} parent=5 // pred_check
        %p364 = pneg %p363
      $region58: #{tpu_custom_call.1} parent=5 // pred_check_branch
        %366 = sbr.rel (%p364) target = $region60
      $region59: #{tpu_custom_call.1} parent=5 // pred_region
        // Predicated region
        $region61: #{tpu_custom_call.1} parent=59 // pred_check
          %p367 = pneg %p42
        $region62: #{tpu_custom_call.1} parent=59 // pred_check_branch
          %369 = sbr.rel (%p367) target = $region64
        $region63: #{tpu_custom_call.1} parent=59 // pred_region
          %p370 = scmp.lt.s32.totalorder %s22, 1
          %s371 = scalar_select %p370, %s22, 1
          %s372 = smul.addr %s371, 8
          %s373 = scalar_lea.vmem %s0, %s372
        $region64: #{tpu_custom_call.1} parent=59 // pred_fallthru
          _
      $region60: #{tpu_custom_call.1} parent=5 // pred_fallthru
        _
      %p374 = scmp.le.s32.totalorder 1, %s22
      %p375 = scmp.lt.s32.totalorder %s22, 3
      %p376 = pnand %p374, %p375
      %p377 = pneg %p376
      // Predicated region
      $region65: #{tpu_custom_call.1} parent=5 // pred_check
        _
      $region66: #{tpu_custom_call.1} parent=5 // pred_check_branch
        %379 = sbr.rel (%p376) target = $region68
      $region67: #{tpu_custom_call.1} parent=5 // pred_region
        %s380 = ssub.s32 %s22, 1
        // Predicated region
        $region69: #{tpu_custom_call.1} parent=67 // pred_check
          %p381 = pneg %p132
        $region70: #{tpu_custom_call.1} parent=67 // pred_check_branch
          %383 = sbr.rel (%p381) target = $region72
        $region71: #{tpu_custom_call.1} parent=67 // pred_region
          %384 = dma.done [#allocation7], 256
        $region72: #{tpu_custom_call.1} parent=67 // pred_fallthru
          _
        %p385 = scmp.lt.s32.totalorder %s27, 1
        %s386 = scalar_select %p385, %s27, 1
        %s387 = smul.addr %s386, 8
        %s388 = scalar_lea.vmem %s0, %s387
        %p389 = pneg %p48
        %p390 = pneg %p45
        %p391 = pneg %p69
        %p392 = pneg %p66
        %p393 = pneg %p90
        %p394 = pneg %p87
        %p395 = pneg %p111
        %p396 = pneg %p108
        %p397 = pneg %p132
        %p398 = pneg %p129
        %p399 = pneg %p153
        %p400 = pneg %p150
        %p401 = pneg %p174
        %p402 = pneg %p171
        %p403 = pneg %p195
        %p404 = pneg %p192
        %p405 = pneg %p216
        %p406 = pneg %p213
        %p407 = pneg %p237
        %p408 = pneg %p234
        %p409 = pneg %p258
        %p410 = pneg %p255
        %p411 = pneg %p279
        %p412 = pneg %p276
        %p413 = pneg %p305
        %p414 = pneg %p302
        %s415 = sand.u32 %s292, 1
        %s416 = scalar_lea.sflag [#allocation8], %s415
        %s417 = sand.u32 %s292, 1
        %s418 = smul.addr %s417, 8
        %s419 = scalar_lea.vmem [#allocation9], %s418
        %p420 = scmp.lt.s32.totalorder %s27, 1
        %s421 = scalar_select %p420, %s27, 1
        %s422 = smul.addr %s421, 8
        %s423 = scalar_lea.vmem %s0, %s422
        %v425 = vld [vmem:[%s423] sm:$0xff]
        %v426 = vpack.c.bf16 %v425, %v425
        %v427 = vld [vmem:[%s1] sm:$0xf]
        %v428 = vld [vmem:[%s1 + $0x4] sm:$0xf]
        %v429 = vld [vmem:[%s1 + $0x8] sm:$0xf]
        %v430 = vld [vmem:[%s1 + $0xc] sm:$0xf]
        %v435 = vunpack.c.l.b16 %v427
        %v436 = vunpack.c.l.b16 %v428
        %v437 = vunpack.c.l.b16 %v429
        %v438 = vunpack.c.l.b16 %v430
        %v439 = vpack.c.b16 %v436, %v435
        %v440 = vpack.c.b16 %v438, %v437
        %vm443 = vcmask 261120
        %v445 = vsel %vm443, %v426, 0
        %447 = vmatprep.subr.bf16.mxu0 0
        %448 = vmatpush1.bf16.msra.mxu0 0
        %449 = vmatprep.subr.bf16.mxu0 0
        %450 = vmatpush1.bf16.msra.mxu0 0
        %451 = vmatprep.subr.bf16.mxu0 0
        %452 = vmatpush1.bf16.msra.mxu0 0
        %453 = vmatprep.subr.bf16.mxu0 0
        %454 = vmatpush1.bf16.msra.mxu0 0
        %455 = vmatprep.subr.bf16.mxu0 0
        %456 = vmatpush1.bf16.msra.mxu0 0
        %457 = vmatprep.subr.bf16.mxu0 0
        %458 = vmatpush1.bf16.msra.mxu0 0
        %459 = vmatprep.subr.bf16.mxu0 0
        %460 = vmatpush1.bf16.msra.mxu0 %v440
        %461 = vmatprep.subr.bf16.mxu0 0
        %462 = vmatpush1.bf16.msra.mxu0 %v439
        %463 = vmatprep.subr.bf16.mxu0 0
        %464 = vmatpush2.bf16.msra.mxu0 0
        %465 = vmatprep.subr.bf16.mxu0 0
        %466 = vmatpush2.bf16.msra.mxu0 0
        %467 = vmatprep.subr.bf16.mxu0 0
        %468 = vmatpush2.bf16.msra.mxu0 0
        %469 = vmatprep.subr.bf16.mxu0 0
        %470 = vmatpush2.bf16.msra.mxu0 0
        %471 = vmatprep.subr.bf16.mxu0 0
        %472 = vmatpush2.bf16.msra.mxu0 0
        %473 = vmatprep.subr.bf16.mxu0 0
        %474 = vmatpush2.bf16.msra.mxu0 0
        %475 = vmatprep.subr.bf16.mxu0 0
        %476 = vmatpush2.bf16.msra.mxu0 0
        %477 = vmatprep.subr.bf16.mxu0 0
        %478 = vmatpush2.bf16.msra.mxu0 0
        %479 = vmatprep.mubr.bf16.mxu0 0
        %480 = vmatmul.mubr.bf16.gmra.mxu0 %v445
        %v481 = vpop.f32.mrf.mxu0
        %v482 = vadd.f32 0.0, %v481
        %v483 = vpop.f32.mrf.mxu0
        %v484 = vpop.f32.mrf.mxu0
        %v485 = vpop.f32.mrf.mxu0
        %486 = vdwg.mxu0
        %v487 = vpack.c.bf16 %v482, %v482
        %vm488 = vcmask 257024
        %489 = vst.msk [vmem:[#allocation2] sm:$0xf] %vm488, %v487
        %s490 = scalar_lea.vmem %s1, 16
        %v491 = vld [vmem:[%s490] sm:$0xf]
        %v492 = vld [vmem:[%s490 + $0x4] sm:$0xf]
        %v493 = vld [vmem:[%s490 + $0x8] sm:$0xf]
        %v494 = vld [vmem:[%s490 + $0xc] sm:$0xf]
        %v499 = vunpack.c.l.b16 %v491
        %v500 = vunpack.c.l.b16 %v492
        %v501 = vunpack.c.l.b16 %v493
        %v502 = vunpack.c.l.b16 %v494
        %v503 = vpack.c.b16 %v500, %v499
        %v504 = vpack.c.b16 %v502, %v501
        %507 = vmatprep.subr.bf16.mxu0 0
        %508 = vmatpush1.bf16.msra.mxu0 0
        %509 = vmatprep.subr.bf16.mxu0 0
        %510 = vmatpush1.bf16.msra.mxu0 0
        %511 = vmatprep.subr.bf16.mxu0 0
        %512 = vmatpush1.bf16.msra.mxu0 0
        %513 = vmatprep.subr.bf16.mxu0 0
        %514 = vmatpush1.bf16.msra.mxu0 0
        %515 = vmatprep.subr.bf16.mxu0 0
        %516 = vmatpush1.bf16.msra.mxu0 0
        %517 = vmatprep.subr.bf16.mxu0 0
        %518 = vmatpush1.bf16.msra.mxu0 0
        %519 = vmatprep.subr.bf16.mxu0 0
        %520 = vmatpush1.bf16.msra.mxu0 %v504
        %521 = vmatprep.subr.bf16.mxu0 0
        %522 = vmatpush1.bf16.msra.mxu0 %v503
        %523 = vmatprep.subr.bf16.mxu0 0
        %524 = vmatpush2.bf16.msra.mxu0 0
        %525 = vmatprep.subr.bf16.mxu0 0
        %526 = vmatpush2.bf16.msra.mxu0 0
        %527 = vmatprep.subr.bf16.mxu0 0
        %528 = vmatpush2.bf16.msra.mxu0 0
        %529 = vmatprep.subr.bf16.mxu0 0
        %530 = vmatpush2.bf16.msra.mxu0 0
        %531 = vmatprep.subr.bf16.mxu0 0
        %532 = vmatpush2.bf16.msra.mxu0 0
        %533 = vmatprep.subr.bf16.mxu0 0
        %534 = vmatpush2.bf16.msra.mxu0 0
        %535 = vmatprep.subr.bf16.mxu0 0
        %536 = vmatpush2.bf16.msra.mxu0 0
        %537 = vmatprep.subr.bf16.mxu0 0
        %538 = vmatpush2.bf16.msra.mxu0 0
        %539 = vmatprep.mubr.bf16.mxu0 0
        %540 = vmatmul.mubr.bf16.gmra.mxu0 %v445
        %v541 = vpop.f32.mrf.mxu0
        %v542 = vadd.f32 0.0, %v541
        %v543 = vpop.f32.mrf.mxu0
        %v544 = vpop.f32.mrf.mxu0
        %v545 = vpop.f32.mrf.mxu0
        %546 = vdwg.mxu0
        %v547 = vpack.c.bf16 %v542, %v542
        %548 = vst.msk [vmem:[#allocation3] sm:$0xf] %vm488, %v547
        %s549 = scalar_lea.vmem %s1, 32
        %v550 = vld [vmem:[%s549] sm:$0xf]
        %v551 = vld [vmem:[%s549 + $0x4] sm:$0xf]
        %v552 = vld [vmem:[%s549 + $0x8] sm:$0xf]
        %v553 = vld [vmem:[%s549 + $0xc] sm:$0xf]
        %v558 = vunpack.c.l.b16 %v550
        %v559 = vunpack.c.l.b16 %v551
        %v560 = vunpack.c.l.b16 %v552
        %v561 = vunpack.c.l.b16 %v553
        %v562 = vpack.c.b16 %v559, %v558
        %v563 = vpack.c.b16 %v561, %v560
        %566 = vmatprep.subr.bf16.mxu0 0
        %567 = vmatpush1.bf16.msra.mxu0 0
        %568 = vmatprep.subr.bf16.mxu0 0
        %569 = vmatpush1.bf16.msra.mxu0 0
        %570 = vmatprep.subr.bf16.mxu0 0
        %571 = vmatpush1.bf16.msra.mxu0 0
        %572 = vmatprep.subr.bf16.mxu0 0
        %573 = vmatpush1.bf16.msra.mxu0 0
        %574 = vmatprep.subr.bf16.mxu0 0
        %575 = vmatpush1.bf16.msra.mxu0 0
        %576 = vmatprep.subr.bf16.mxu0 0
        %577 = vmatpush1.bf16.msra.mxu0 0
        %578 = vmatprep.subr.bf16.mxu0 0
        %579 = vmatpush1.bf16.msra.mxu0 %v563
        %580 = vmatprep.subr.bf16.mxu0 0
        %581 = vmatpush1.bf16.msra.mxu0 %v562
        %582 = vmatprep.subr.bf16.mxu0 0
        %583 = vmatpush2.bf16.msra.mxu0 0
        %584 = vmatprep.subr.bf16.mxu0 0
        %585 = vmatpush2.bf16.msra.mxu0 0
        %586 = vmatprep.subr.bf16.mxu0 0
        %587 = vmatpush2.bf16.msra.mxu0 0
        %588 = vmatprep.subr.bf16.mxu0 0
        %589 = vmatpush2.bf16.msra.mxu0 0
        %590 = vmatprep.subr.bf16.mxu0 0
        %591 = vmatpush2.bf16.msra.mxu0 0
        %592 = vmatprep.subr.bf16.mxu0 0
        %593 = vmatpush2.bf16.msra.mxu0 0
        %594 = vmatprep.subr.bf16.mxu0 0
        %595 = vmatpush2.bf16.msra.mxu0 0
        %596 = vmatprep.subr.bf16.mxu0 0
        %597 = vmatpush2.bf16.msra.mxu0 0
        %598 = vmatprep.mubr.bf16.mxu0 0
        %599 = vmatmul.mubr.bf16.gmra.mxu0 %v445
        %v600 = vpop.f32.mrf.mxu0
        %v601 = vadd.f32 0.0, %v600
        %v602 = vpop.f32.mrf.mxu0
        %v603 = vpop.f32.mrf.mxu0
        %v604 = vpop.f32.mrf.mxu0
        %605 = vdwg.mxu0
        %v606 = vpack.c.bf16 %v601, %v601
        %607 = vst.msk [vmem:[#allocation4] sm:$0xf] %vm488, %v606
        %v608 = vlaneseq
        %v609 = vshrl.u32 %v608, 7
        %v610 = vlaneseq
        %v611 = vand.u32 %v610, 127
        %vm612 = vcmp.ge.s32.totalorder %v609, %v611
        %v613 = vsel %vm612, 0.0, -1e+30
        %v614 = vld [vmem:[#allocation2] sm:$0xf]
        %v615 = vld [vmem:[#allocation3] sm:$0xf]
        %v616 = vld [vmem:[#allocation4] sm:$0xf]
        %vm617 = vcmask 64512
        %v619 = vsel %vm617, %v614, 0
        %v622 = vsel %vm617, %v615, 0
        %624 = vmatprep.subr.bf16.mxu0 0
        %625 = vmatpush1.bf16.xpose.msra.mxu0 0
        %626 = vmatprep.subr.bf16.mxu0 0
        %627 = vmatpush1.bf16.xpose.msra.mxu0 0
        %628 = vmatprep.subr.bf16.mxu0 0
        %629 = vmatpush1.bf16.xpose.msra.mxu0 0
        %630 = vmatprep.subr.bf16.mxu0 0
        %631 = vmatpush1.bf16.xpose.msra.mxu0 0
        %632 = vmatprep.subr.bf16.mxu0 0
        %633 = vmatpush1.bf16.xpose.msra.mxu0 0
        %634 = vmatprep.subr.bf16.mxu0 0
        %635 = vmatpush1.bf16.xpose.msra.mxu0 0
        %636 = vmatprep.subr.bf16.mxu0 0
        %637 = vmatpush1.bf16.xpose.msra.mxu0 0
        %638 = vmatprep.subr.bf16.mxu0 0
        %639 = vmatpush1.bf16.xpose.msra.mxu0 %v622
        %640 = vmatprep.subr.bf16.mxu0 0
        %641 = vmatpush2.bf16.xpose.msra.mxu0 0
        %642 = vmatprep.subr.bf16.mxu0 0
        %643 = vmatpush2.bf16.xpose.msra.mxu0 0
        %644 = vmatprep.subr.bf16.mxu0 0
        %645 = vmatpush2.bf16.xpose.msra.mxu0 0
        %646 = vmatprep.subr.bf16.mxu0 0
        %647 = vmatpush2.bf16.xpose.msra.mxu0 0
        %648 = vmatprep.subr.bf16.mxu0 0
        %649 = vmatpush2.bf16.xpose.msra.mxu0 0
        %650 = vmatprep.subr.bf16.mxu0 0
        %651 = vmatpush2.bf16.xpose.msra.mxu0 0
        %652 = vmatprep.subr.bf16.mxu0 0
        %653 = vmatpush2.bf16.xpose.msra.mxu0 0
        %654 = vmatprep.subr.bf16.mxu0 0
        %655 = vmatpush2.bf16.xpose.msra.mxu0 0
        %656 = vmatprep.mubr.bf16.mxu0 0
        %657 = vmatmul.mubr.bf16.gmra.mxu0 %v619
        %v658 = vpop.f32.mrf.mxu0
        %v659 = vadd.f32 %v613, %v658
        %v660 = vpop.f32.mrf.mxu0
        %v661 = vpop.f32.mrf.mxu0
        %v662 = vpop.f32.mrf.mxu0
        %663 = vdwg.mxu0
        %v664 = vsel %vm617, %v659, -inf
        %665 = vmax.xlane.f32.xlu0 %v664
        %v666 = vpop.xlane.xlu0 %665
        %v667 = vsub.f32 %v659, %v666
        %v668 = vmul.f32 %v667, 1.442695
        %v669 = vpow.pop %v668
        %v670 = vsel %vm617, %v669, 0.0
        %671 = vadd.xlane.f32.xlu0 %v670
        %v672 = vpop.xlane.xlu0 %671
        %v673 = vrcp.pop %v672
        %v674 = vpack.c.bf16 %v669, %v669
        %v676 = vsel %vm617, %v674, 0
        %vm678 = vcmask 1043456
        %v680 = vsel %vm678, %v616, 0
        %682 = vmatprep.subr.bf16.mxu0 0
        %683 = vmatpush1.bf16.msra.mxu0 0
        %684 = vmatprep.subr.bf16.mxu0 0
        %685 = vmatpush1.bf16.msra.mxu0 0
        %686 = vmatprep.subr.bf16.mxu0 0
        %687 = vmatpush1.bf16.msra.mxu0 0
        %688 = vmatprep.subr.bf16.mxu0 0
        %689 = vmatpush1.bf16.msra.mxu0 0
        %690 = vmatprep.subr.bf16.mxu0 0
        %691 = vmatpush1.bf16.msra.mxu0 0
        %692 = vmatprep.subr.bf16.mxu0 0
        %693 = vmatpush1.bf16.msra.mxu0 0
        %694 = vmatprep.subr.bf16.mxu0 0
        %695 = vmatpush1.bf16.msra.mxu0 0
        %696 = vmatprep.subr.bf16.mxu0 0
        %697 = vmatpush1.bf16.msra.mxu0 %v680
        %698 = vmatprep.subr.bf16.mxu0 0
        %699 = vmatpush2.bf16.msra.mxu0 0
        %700 = vmatprep.subr.bf16.mxu0 0
        %701 = vmatpush2.bf16.msra.mxu0 0
        %702 = vmatprep.subr.bf16.mxu0 0
        %703 = vmatpush2.bf16.msra.mxu0 0
        %704 = vmatprep.subr.bf16.mxu0 0
        %705 = vmatpush2.bf16.msra.mxu0 0
        %706 = vmatprep.subr.bf16.mxu0 0
        %707 = vmatpush2.bf16.msra.mxu0 0
        %708 = vmatprep.subr.bf16.mxu0 0
        %709 = vmatpush2.bf16.msra.mxu0 0
        %710 = vmatprep.subr.bf16.mxu0 0
        %711 = vmatpush2.bf16.msra.mxu0 0
        %712 = vmatprep.subr.bf16.mxu0 0
        %713 = vmatpush2.bf16.msra.mxu0 0
        %714 = vmatprep.mubr.bf16.mxu0 0
        %715 = vmatmul.mubr.bf16.gmra.mxu0 %v676
        %v716 = vpop.f32.mrf.mxu0
        %v717 = vadd.f32 0.0, %v716
        %v718 = vpop.f32.mrf.mxu0
        %v719 = vpop.f32.mrf.mxu0
        %v720 = vpop.f32.mrf.mxu0
        %721 = vdwg.mxu0
        %v722 = vmul.f32 %v717, %v673
        %v723 = vpack.c.bf16 %v722, %v722
        %vm724 = vcmask 60416
        %725 = vst.msk [vmem:[#allocation5] sm:$0xf] %vm724, %v723
        %v726 = vld [vmem:[#allocation2] sm:$0xf]
        %v727 = vld [vmem:[#allocation3] sm:$0xf]
        %v728 = vld [vmem:[#allocation4] sm:$0xf]
        %v730 = vunpack.c.l.b16 %v726
        %v731 = vpack.c.b16 %v730, %v730
        %732 = vrot.lane.b32.xlu0 %v731, 120
        %v733 = vpop.permute.xlu0 %732
        %v735 = vunpack.c.l.b16 %v727
        %v736 = vpack.c.b16 %v735, %v735
        %737 = vrot.lane.b32.xlu0 %v736, 120
        %v738 = vpop.permute.xlu0 %737
        %v740 = vsel %vm617, %v733, 0
        %v743 = vsel %vm617, %v738, 0
        %745 = vmatprep.subr.bf16.mxu0 0
        %746 = vmatpush1.bf16.xpose.msra.mxu0 0
        %747 = vmatprep.subr.bf16.mxu0 0
        %748 = vmatpush1.bf16.xpose.msra.mxu0 0
        %749 = vmatprep.subr.bf16.mxu0 0
        %750 = vmatpush1.bf16.xpose.msra.mxu0 0
        %751 = vmatprep.subr.bf16.mxu0 0
        %752 = vmatpush1.bf16.xpose.msra.mxu0 0
        %753 = vmatprep.subr.bf16.mxu0 0
        %754 = vmatpush1.bf16.xpose.msra.mxu0 0
        %755 = vmatprep.subr.bf16.mxu0 0
        %756 = vmatpush1.bf16.xpose.msra.mxu0 0
        %757 = vmatprep.subr.bf16.mxu0 0
        %758 = vmatpush1.bf16.xpose.msra.mxu0 0
        %759 = vmatprep.subr.bf16.mxu0 0
        %760 = vmatpush1.bf16.xpose.msra.mxu0 %v743
        %761 = vmatprep.subr.bf16.mxu0 0
        %762 = vmatpush2.bf16.xpose.msra.mxu0 0
        %763 = vmatprep.subr.bf16.mxu0 0
        %764 = vmatpush2.bf16.xpose.msra.mxu0 0
        %765 = vmatprep.subr.bf16.mxu0 0
        %766 = vmatpush2.bf16.xpose.msra.mxu0 0
        %767 = vmatprep.subr.bf16.mxu0 0
        %768 = vmatpush2.bf16.xpose.msra.mxu0 0
        %769 = vmatprep.subr.bf16.mxu0 0
        %770 = vmatpush2.bf16.xpose.msra.mxu0 0
        %771 = vmatprep.subr.bf16.mxu0 0
        %772 = vmatpush2.bf16.xpose.msra.mxu0 0
        %773 = vmatprep.subr.bf16.mxu0 0
        %774 = vmatpush2.bf16.xpose.msra.mxu0 0
        %775 = vmatprep.subr.bf16.mxu0 0
        %776 = vmatpush2.bf16.xpose.msra.mxu0 0
        %777 = vmatprep.mubr.bf16.mxu0 0
        %778 = vmatmul.mubr.bf16.gmra.mxu0 %v740
        %v779 = vpop.f32.mrf.mxu0
        %v780 = vadd.f32 %v613, %v779
        %v781 = vpop.f32.mrf.mxu0
        %v782 = vpop.f32.mrf.mxu0
        %v783 = vpop.f32.mrf.mxu0
        %784 = vdwg.mxu0
        %v785 = vsel %vm617, %v780, -inf
        %786 = vmax.xlane.f32.xlu0 %v785
        %v787 = vpop.xlane.xlu0 %786
        %v788 = vsub.f32 %v780, %v787
        %v789 = vmul.f32 %v788, 1.442695
        %v790 = vpow.pop %v789
        %v791 = vsel %vm617, %v790, 0.0
        %792 = vadd.xlane.f32.xlu0 %v791
        %v793 = vpop.xlane.xlu0 %792
        %v794 = vrcp.pop %v793
        %v795 = vpack.c.bf16 %v790, %v790
        %v797 = vunpack.c.l.b16 %v728
        %v798 = vpack.c.b16 %v797, %v797
        %799 = vrot.lane.b32.xlu0 %v798, 120
        %v800 = vpop.permute.xlu0 %799
        %v802 = vsel %vm617, %v795, 0
        %v805 = vsel %vm678, %v800, 0
        %807 = vmatprep.subr.bf16.mxu0 0
        %808 = vmatpush1.bf16.msra.mxu0 0
        %809 = vmatprep.subr.bf16.mxu0 0
        %810 = vmatpush1.bf16.msra.mxu0 0
        %811 = vmatprep.subr.bf16.mxu0 0
        %812 = vmatpush1.bf16.msra.mxu0 0
        %813 = vmatprep.subr.bf16.mxu0 0
        %814 = vmatpush1.bf16.msra.mxu0 0
        %815 = vmatprep.subr.bf16.mxu0 0
        %816 = vmatpush1.bf16.msra.mxu0 0
        %817 = vmatprep.subr.bf16.mxu0 0
        %818 = vmatpush1.bf16.msra.mxu0 0
        %819 = vmatprep.subr.bf16.mxu0 0
        %820 = vmatpush1.bf16.msra.mxu0 0
        %821 = vmatprep.subr.bf16.mxu0 0
        %822 = vmatpush1.bf16.msra.mxu0 %v805
        %823 = vmatprep.subr.bf16.mxu0 0
        %824 = vmatpush2.bf16.msra.mxu0 0
        %825 = vmatprep.subr.bf16.mxu0 0
        %826 = vmatpush2.bf16.msra.mxu0 0
        %827 = vmatprep.subr.bf16.mxu0 0
        %828 = vmatpush2.bf16.msra.mxu0 0
        %829 = vmatprep.subr.bf16.mxu0 0
        %830 = vmatpush2.bf16.msra.mxu0 0
        %831 = vmatprep.subr.bf16.mxu0 0
        %832 = vmatpush2.bf16.msra.mxu0 0
        %833 = vmatprep.subr.bf16.mxu0 0
        %834 = vmatpush2.bf16.msra.mxu0 0
        %835 = vmatprep.subr.bf16.mxu0 0
        %836 = vmatpush2.bf16.msra.mxu0 0
        %837 = vmatprep.subr.bf16.mxu0 0
        %838 = vmatpush2.bf16.msra.mxu0 0
        %839 = vmatprep.mubr.bf16.mxu0 0
        %840 = vmatmul.mubr.bf16.gmra.mxu0 %v802
        %v841 = vpop.f32.mrf.mxu0
        %v842 = vadd.f32 0.0, %v841
        %v843 = vpop.f32.mrf.mxu0
        %v844 = vpop.f32.mrf.mxu0
        %v845 = vpop.f32.mrf.mxu0
        %846 = vdwg.mxu0
        %v847 = vmul.f32 %v842, %v794
        %v848 = vpack.c.bf16 %v847, %v847
        %v850 = vunpack.c.l.b16 %v848
        %v851 = vpack.c.b16 %v850, %v850
        %852 = vrot.lane.b32.xlu0 %v851, 8
        %v853 = vpop.permute.xlu0 %852
        %vm855 = vcmask 126016
        %856 = vst.msk [vmem:[#allocation5] sm:$0xf] %vm855, %v853
        %v857 = vld [vmem:[#allocation2] sm:$0xf]
        %v858 = vld [vmem:[#allocation3] sm:$0xf]
        %v859 = vld [vmem:[#allocation4] sm:$0xf]
        %v861 = vunpack.c.l.b16 %v857
        %v862 = vpack.c.b16 %v861, %v861
        %863 = vrot.lane.b32.xlu0 %v862, 112
        %v864 = vpop.permute.xlu0 %863
        %v866 = vunpack.c.l.b16 %v858
        %v867 = vpack.c.b16 %v866, %v866
        %868 = vrot.lane.b32.xlu0 %v867, 112
        %v869 = vpop.permute.xlu0 %868
        %v871 = vsel %vm617, %v864, 0
        %v874 = vsel %vm617, %v869, 0
        %876 = vmatprep.subr.bf16.mxu0 0
        %877 = vmatpush1.bf16.xpose.msra.mxu0 0
        %878 = vmatprep.subr.bf16.mxu0 0
        %879 = vmatpush1.bf16.xpose.msra.mxu0 0
        %880 = vmatprep.subr.bf16.mxu0 0
        %881 = vmatpush1.bf16.xpose.msra.mxu0 0
        %882 = vmatprep.subr.bf16.mxu0 0
        %883 = vmatpush1.bf16.xpose.msra.mxu0 0
        %884 = vmatprep.subr.bf16.mxu0 0
        %885 = vmatpush1.bf16.xpose.msra.mxu0 0
        %886 = vmatprep.subr.bf16.mxu0 0
        %887 = vmatpush1.bf16.xpose.msra.mxu0 0
        %888 = vmatprep.subr.bf16.mxu0 0
        %889 = vmatpush1.bf16.xpose.msra.mxu0 0
        %890 = vmatprep.subr.bf16.mxu0 0
        %891 = vmatpush1.bf16.xpose.msra.mxu0 %v874
        %892 = vmatprep.subr.bf16.mxu0 0
        %893 = vmatpush2.bf16.xpose.msra.mxu0 0
        %894 = vmatprep.subr.bf16.mxu0 0
        %895 = vmatpush2.bf16.xpose.msra.mxu0 0
        %896 = vmatprep.subr.bf16.mxu0 0
        %897 = vmatpush2.bf16.xpose.msra.mxu0 0
        %898 = vmatprep.subr.bf16.mxu0 0
        %899 = vmatpush2.bf16.xpose.msra.mxu0 0
        %900 = vmatprep.subr.bf16.mxu0 0
        %901 = vmatpush2.bf16.xpose.msra.mxu0 0
        %902 = vmatprep.subr.bf16.mxu0 0
        %903 = vmatpush2.bf16.xpose.msra.mxu0 0
        %904 = vmatprep.subr.bf16.mxu0 0
        %905 = vmatpush2.bf16.xpose.msra.mxu0 0
        %906 = vmatprep.subr.bf16.mxu0 0
        %907 = vmatpush2.bf16.xpose.msra.mxu0 0
        %908 = vmatprep.mubr.bf16.mxu0 0
        %909 = vmatmul.mubr.bf16.gmra.mxu0 %v871
        %v910 = vpop.f32.mrf.mxu0
        %v911 = vadd.f32 %v613, %v910
        %v912 = vpop.f32.mrf.mxu0
        %v913 = vpop.f32.mrf.mxu0
        %v914 = vpop.f32.mrf.mxu0
        %915 = vdwg.mxu0
        %v916 = vsel %vm617, %v911, -inf
        %917 = vmax.xlane.f32.xlu0 %v916
        %v918 = vpop.xlane.xlu0 %917
        %v919 = vsub.f32 %v911, %v918
        %v920 = vmul.f32 %v919, 1.442695
        %v921 = vpow.pop %v920
        %v922 = vsel %vm617, %v921, 0.0
        %923 = vadd.xlane.f32.xlu0 %v922
        %v924 = vpop.xlane.xlu0 %923
        %v925 = vrcp.pop %v924
        %v926 = vpack.c.bf16 %v921, %v921
        %v928 = vunpack.c.l.b16 %v859
        %v929 = vpack.c.b16 %v928, %v928
        %930 = vrot.lane.b32.xlu0 %v929, 112
        %v931 = vpop.permute.xlu0 %930
        %v933 = vsel %vm617, %v926, 0
        %v936 = vsel %vm678, %v931, 0
        %938 = vmatprep.subr.bf16.mxu0 0
        %939 = vmatpush1.bf16.msra.mxu0 0
        %940 = vmatprep.subr.bf16.mxu0 0
        %941 = vmatpush1.bf16.msra.mxu0 0
        %942 = vmatprep.subr.bf16.mxu0 0
        %943 = vmatpush1.bf16.msra.mxu0 0
        %944 = vmatprep.subr.bf16.mxu0 0
        %945 = vmatpush1.bf16.msra.mxu0 0
        %946 = vmatprep.subr.bf16.mxu0 0
        %947 = vmatpush1.bf16.msra.mxu0 0
        %948 = vmatprep.subr.bf16.mxu0 0
        %949 = vmatpush1.bf16.msra.mxu0 0
        %950 = vmatprep.subr.bf16.mxu0 0
        %951 = vmatpush1.bf16.msra.mxu0 0
        %952 = vmatprep.subr.bf16.mxu0 0
        %953 = vmatpush1.bf16.msra.mxu0 %v936
        %954 = vmatprep.subr.bf16.mxu0 0
        %955 = vmatpush2.bf16.msra.mxu0 0
        %956 = vmatprep.subr.bf16.mxu0 0
        %957 = vmatpush2.bf16.msra.mxu0 0
        %958 = vmatprep.subr.bf16.mxu0 0
        %959 = vmatpush2.bf16.msra.mxu0 0
        %960 = vmatprep.subr.bf16.mxu0 0
        %961 = vmatpush2.bf16.msra.mxu0 0
        %962 = vmatprep.subr.bf16.mxu0 0
        %963 = vmatpush2.bf16.msra.mxu0 0
        %964 = vmatprep.subr.bf16.mxu0 0
        %965 = vmatpush2.bf16.msra.mxu0 0
        %966 = vmatprep.subr.bf16.mxu0 0
        %967 = vmatpush2.bf16.msra.mxu0 0
        %968 = vmatprep.subr.bf16.mxu0 0
        %969 = vmatpush2.bf16.msra.mxu0 0
        %970 = vmatprep.mubr.bf16.mxu0 0
        %971 = vmatmul.mubr.bf16.gmra.mxu0 %v933
        %v972 = vpop.f32.mrf.mxu0
        %v973 = vadd.f32 0.0, %v972
        %v974 = vpop.f32.mrf.mxu0
        %v975 = vpop.f32.mrf.mxu0
        %v976 = vpop.f32.mrf.mxu0
        %977 = vdwg.mxu0
        %v978 = vmul.f32 %v973, %v925
        %v979 = vpack.c.bf16 %v978, %v978
        %v981 = vunpack.c.l.b16 %v979
        %v982 = vpack.c.b16 %v981, %v981
        %983 = vrot.lane.b32.xlu0 %v982, 16
        %v984 = vpop.permute.xlu0 %983
        %vm986 = vcmask 191616
        %987 = vst.msk [vmem:[#allocation5] sm:$0xf] %vm986, %v984
        %v988 = vld [vmem:[#allocation2] sm:$0xf]
        %v989 = vld [vmem:[#allocation3] sm:$0xf]
        %v990 = vld [vmem:[#allocation4] sm:$0xf]
        %v992 = vunpack.c.l.b16 %v988
        %v993 = vpack.c.b16 %v992, %v992
        %994 = vrot.lane.b32.xlu0 %v993, 104
        %v995 = vpop.permute.xlu0 %994
        %v997 = vunpack.c.l.b16 %v989
        %v998 = vpack.c.b16 %v997, %v997
        %999 = vrot.lane.b32.xlu0 %v998, 104
        %v1000 = vpop.permute.xlu0 %999
        %v1002 = vsel %vm617, %v995, 0
        %v1005 = vsel %vm617, %v1000, 0
        %1007 = vmatprep.subr.bf16.mxu0 0
        %1008 = vmatpush1.bf16.xpose.msra.mxu0 0
        %1009 = vmatprep.subr.bf16.mxu0 0
        %1010 = vmatpush1.bf16.xpose.msra.mxu0 0
        %1011 = vmatprep.subr.bf16.mxu0 0
        %1012 = vmatpush1.bf16.xpose.msra.mxu0 0
        %1013 = vmatprep.subr.bf16.mxu0 0
        %1014 = vmatpush1.bf16.xpose.msra.mxu0 0
        %1015 = vmatprep.subr.bf16.mxu0 0
        %1016 = vmatpush1.bf16.xpose.msra.mxu0 0
        %1017 = vmatprep.subr.bf16.mxu0 0
        %1018 = vmatpush1.bf16.xpose.msra.mxu0 0
        %1019 = vmatprep.subr.bf16.mxu0 0
        %1020 = vmatpush1.bf16.xpose.msra.mxu0 0
        %1021 = vmatprep.subr.bf16.mxu0 0
        %1022 = vmatpush1.bf16.xpose.msra.mxu0 %v1005
        %1023 = vmatprep.subr.bf16.mxu0 0
        %1024 = vmatpush2.bf16.xpose.msra.mxu0 0
        %1025 = vmatprep.subr.bf16.mxu0 0
        %1026 = vmatpush2.bf16.xpose.msra.mxu0 0
        %1027 = vmatprep.subr.bf16.mxu0 0
        %1028 = vmatpush2.bf16.xpose.msra.mxu0 0
        %1029 = vmatprep.subr.bf16.mxu0 0
        %1030 = vmatpush2.bf16.xpose.msra.mxu0 0
        %1031 = vmatprep.subr.bf16.mxu0 0
        %1032 = vmatpush2.bf16.xpose.msra.mxu0 0
        %1033 = vmatprep.subr.bf16.mxu0 0
        %1034 = vmatpush2.bf16.xpose.msra.mxu0 0
        %1035 = vmatprep.subr.bf16.mxu0 0
        %1036 = vmatpush2.bf16.xpose.msra.mxu0 0
        %1037 = vmatprep.subr.bf16.mxu0 0
        %1038 = vmatpush2.bf16.xpose.msra.mxu0 0
        %1039 = vmatprep.mubr.bf16.mxu0 0
        %1040 = vmatmul.mubr.bf16.gmra.mxu0 %v1002
        %v1041 = vpop.f32.mrf.mxu0
        %v1042 = vadd.f32 %v613, %v1041
        %v1043 = vpop.f32.mrf.mxu0
        %v1044 = vpop.f32.mrf.mxu0
        %v1045 = vpop.f32.mrf.mxu0
        %1046 = vdwg.mxu0
        %v1047 = vsel %vm617, %v1042, -inf
        %1048 = vmax.xlane.f32.xlu0 %v1047
        %v1049 = vpop.xlane.xlu0 %1048
        %v1050 = vsub.f32 %v1042, %v1049
        %v1051 = vmul.f32 %v1050, 1.442695
        %v1052 = vpow.pop %v1051
        %v1053 = vsel %vm617, %v1052, 0.0
        %1054 = vadd.xlane.f32.xlu0 %v1053
        %v1055 = vpop.xlane.xlu0 %1054
        %v1056 = vrcp.pop %v1055
        %v1057 = vpack.c.bf16 %v1052, %v1052
        %v1059 = vunpack.c.l.b16 %v990
        %v1060 = vpack.c.b16 %v1059, %v1059
        %1061 = vrot.lane.b32.xlu0 %v1060, 104
        %v1062 = vpop.permute.xlu0 %1061
        %v1064 = vsel %vm617, %v1057, 0
        %v1067 = vsel %vm678, %v1062, 0
        %1069 = vmatprep.subr.bf16.mxu0 0
        %1070 = vmatpush1.bf16.msra.mxu0 0
        %1071 = vmatprep.subr.bf16.mxu0 0
        %1072 = vmatpush1.bf16.msra.mxu0 0
        %1073 = vmatprep.subr.bf16.mxu0 0
        %1074 = vmatpush1.bf16.msra.mxu0 0
        %1075 = vmatprep.subr.bf16.mxu0 0
        %1076 = vmatpush1.bf16.msra.mxu0 0
        %1077 = vmatprep.subr.bf16.mxu0 0
        %1078 = vmatpush1.bf16.msra.mxu0 0
        %1079 = vmatprep.subr.bf16.mxu0 0
        %1080 = vmatpush1.bf16.msra.mxu0 0
        %1081 = vmatprep.subr.bf16.mxu0 0
        %1082 = vmatpush1.bf16.msra.mxu0 0
        %1083 = vmatprep.subr.bf16.mxu0 0
        %1084 = vmatpush1.bf16.msra.mxu0 %v1067
        %1085 = vmatprep.subr.bf16.mxu0 0
        %1086 = vmatpush2.bf16.msra.mxu0 0
        %1087 = vmatprep.subr.bf16.mxu0 0
        %1088 = vmatpush2.bf16.msra.mxu0 0
        %1089 = vmatprep.subr.bf16.mxu0 0
        %1090 = vmatpush2.bf16.msra.mxu0 0
        %1091 = vmatprep.subr.bf16.mxu0 0
        %1092 = vmatpush2.bf16.msra.mxu0 0
        %1093 = vmatprep.subr.bf16.mxu0 0
        %1094 = vmatpush2.bf16.msra.mxu0 0
        %1095 = vmatprep.subr.bf16.mxu0 0
        %1096 = vmatpush2.bf16.msra.mxu0 0
        %1097 = vmatprep.subr.bf16.mxu0 0
        %1098 = vmatpush2.bf16.msra.mxu0 0
        %1099 = vmatprep.subr.bf16.mxu0 0
        %1100 = vmatpush2.bf16.msra.mxu0 0
        %1101 = vmatprep.mubr.bf16.mxu0 0
        %1102 = vmatmul.mubr.bf16.gmra.mxu0 %v1064
        %v1103 = vpop.f32.mrf.mxu0
        %v1104 = vadd.f32 0.0, %v1103
        %v1105 = vpop.f32.mrf.mxu0
        %v1106 = vpop.f32.mrf.mxu0
        %v1107 = vpop.f32.mrf.mxu0
        %1108 = vdwg.mxu0
        %v1109 = vmul.f32 %v1104, %v1056
        %v1110 = vpack.c.bf16 %v1109, %v1109
        %v1112 = vunpack.c.l.b16 %v1110
        %v1113 = vpack.c.b16 %v1112, %v1112
        %1114 = vrot.lane.b32.xlu0 %v1113, 24
        %v1115 = vpop.permute.xlu0 %1114
        %vm1117 = vcmask 257216
        %1118 = vst.msk [vmem:[#allocation5] sm:$0xf] %vm1117, %v1115
        %v1119 = vld [vmem:[#allocation5] sm:$0xf]
        %v1120 = vld [vmem:[%s2] sm:$0xf]
        %v1121 = vld [vmem:[%s2 + $0x4] sm:$0xf]
        %v1122 = vld [vmem:[%s2 + $0x8] sm:$0xf]
        %v1123 = vld [vmem:[%s2 + $0xc] sm:$0xf]
        %v1124 = vld [vmem:[%s3] sm:$0x1]
        %v1126 = vlaneseq
        %v1127 = vshrl.u32 %v1126, 7
        %v1128 = vsub.s32 0, %v1127
        %v1129 = vrot.slane %v1124, %v1128
        %v1135 = vunpack.c.l.b16 %v1120
        %v1136 = vunpack.c.l.b16 %v1121
        %v1137 = vunpack.c.l.b16 %v1122
        %v1138 = vunpack.c.l.b16 %v1123
        %v1139 = vpack.c.b16 %v1136, %v1135
        %v1140 = vpack.c.b16 %v1138, %v1137
        %v1144 = vsel %vm443, %v1119, 0
        %1146 = vmatprep.subr.bf16.mxu0 0
        %1147 = vmatpush1.bf16.msra.mxu0 0
        %1148 = vmatprep.subr.bf16.mxu0 0
        %1149 = vmatpush1.bf16.msra.mxu0 0
        %1150 = vmatprep.subr.bf16.mxu0 0
        %1151 = vmatpush1.bf16.msra.mxu0 0
        %1152 = vmatprep.subr.bf16.mxu0 0
        %1153 = vmatpush1.bf16.msra.mxu0 0
        %1154 = vmatprep.subr.bf16.mxu0 0
        %1155 = vmatpush1.bf16.msra.mxu0 0
        %1156 = vmatprep.subr.bf16.mxu0 0
        %1157 = vmatpush1.bf16.msra.mxu0 0
        %1158 = vmatprep.subr.bf16.mxu0 0
        %1159 = vmatpush1.bf16.msra.mxu0 %v1140
        %1160 = vmatprep.subr.bf16.mxu0 0
        %1161 = vmatpush1.bf16.msra.mxu0 %v1139
        %1162 = vmatprep.subr.bf16.mxu0 0
        %1163 = vmatpush2.bf16.msra.mxu0 0
        %1164 = vmatprep.subr.bf16.mxu0 0
        %1165 = vmatpush2.bf16.msra.mxu0 0
        %1166 = vmatprep.subr.bf16.mxu0 0
        %1167 = vmatpush2.bf16.msra.mxu0 0
        %1168 = vmatprep.subr.bf16.mxu0 0
        %1169 = vmatpush2.bf16.msra.mxu0 0
        %1170 = vmatprep.subr.bf16.mxu0 0
        %1171 = vmatpush2.bf16.msra.mxu0 0
        %1172 = vmatprep.subr.bf16.mxu0 0
        %1173 = vmatpush2.bf16.msra.mxu0 0
        %1174 = vmatprep.subr.bf16.mxu0 0
        %1175 = vmatpush2.bf16.msra.mxu0 0
        %1176 = vmatprep.subr.bf16.mxu0 0
        %1177 = vmatpush2.bf16.msra.mxu0 0
        %1178 = vmatprep.mubr.bf16.mxu0 0
        %1179 = vmatmul.mubr.bf16.gmra.mxu0 %v1144
        %v1180 = vpop.f32.mrf.mxu0
        %v1181 = vadd.f32 %v1129, %v1180
        %v1182 = vpop.f32.mrf.mxu0
        %v1183 = vpop.f32.mrf.mxu0
        %v1184 = vpop.f32.mrf.mxu0
        %1185 = vdwg.mxu0
        %v1186 = vadd.f32 %v425, %v1181
        %v1187 = vld [vmem:[%s8] sm:$0x1]
        %v1188 = vld [vmem:[%s9] sm:$0x1]
        %v1189 = vsel %vm443, %v1186, 0.0
        %1190 = vadd.xlane.f32.xlu0 %v1189
        %v1191 = vpop.xlane.xlu0 %1190
        %v1192 = vrcp.pop 32.0
        %v1193 = vmul.f32 %v1191, %v1192
        %v1194 = vsub.f32 %v1186, %v1193
        %v1195 = vmul.f32 %v1194, %v1194
        %v1196 = vsel %vm443, %v1195, 0.0
        %1197 = vadd.xlane.f32.xlu0 %v1196
        %v1198 = vpop.xlane.xlu0 %1197
        %v1199 = vmul.f32 %v1198, %v1192
        %v1200 = vadd.f32 %v1199, 1e-05
        %v1201 = vrsqrt.pop %v1200
        %v1202 = vmul.f32 %v1194, %v1201
        %v1204 = vlaneseq
        %v1205 = vshrl.u32 %v1204, 7
        %v1206 = vsub.s32 0, %v1205
        %v1207 = vrot.slane %v1187, %v1206
        %v1209 = vmul.f32 %v1202, %v1207
        %v1211 = vlaneseq
        %v1212 = vshrl.u32 %v1211, 7
        %v1213 = vsub.s32 0, %v1212
        %v1214 = vrot.slane %v1188, %v1213
        %v1216 = vadd.f32 %v1209, %v1214
        %v1217 = vpack.c.bf16 %v1216, %v1216
        %v1218 = vld [vmem:[#allocation6] sm:$0xf]
        %v1219 = vld [vmem:[#allocation6 + $0x4] sm:$0xf]
        %v1220 = vld [vmem:[#allocation6 + $0x8] sm:$0xf]
        %v1221 = vld [vmem:[#allocation6 + $0xc] sm:$0xf]
        %v1222 = vld [vmem:[%s5] sm:$0x1]
        %v1224 = vlaneseq
        %v1225 = vshrl.u32 %v1224, 7
        %v1226 = vsub.s32 0, %v1225
        %v1227 = vrot.slane %v1222, %v1226
        %v1233 = vunpack.c.l.b16 %v1218
        %v1234 = vunpack.c.l.b16 %v1219
        %v1235 = vunpack.c.l.b16 %v1220
        %v1236 = vunpack.c.l.b16 %v1221
        %v1237 = vpack.c.b16 %v1234, %v1233
        %v1238 = vpack.c.b16 %v1236, %v1235
        %v1242 = vsel %vm443, %v1217, 0
        %1244 = vmatprep.subr.bf16.mxu0 0
        %1245 = vmatpush1.bf16.msra.mxu0 0
        %1246 = vmatprep.subr.bf16.mxu0 0
        %1247 = vmatpush1.bf16.msra.mxu0 0
        %1248 = vmatprep.subr.bf16.mxu0 0
        %1249 = vmatpush1.bf16.msra.mxu0 0
        %1250 = vmatprep.subr.bf16.mxu0 0
        %1251 = vmatpush1.bf16.msra.mxu0 0
        %1252 = vmatprep.subr.bf16.mxu0 0
        %1253 = vmatpush1.bf16.msra.mxu0 0
        %1254 = vmatprep.subr.bf16.mxu0 0
        %1255 = vmatpush1.bf16.msra.mxu0 0
        %1256 = vmatprep.subr.bf16.mxu0 0
        %1257 = vmatpush1.bf16.msra.mxu0 %v1238
        %1258 = vmatprep.subr.bf16.mxu0 0
        %1259 = vmatpush1.bf16.msra.mxu0 %v1237
        %1260 = vmatprep.subr.bf16.mxu0 0
        %1261 = vmatpush2.bf16.msra.mxu0 0
        %1262 = vmatprep.subr.bf16.mxu0 0
        %1263 = vmatpush2.bf16.msra.mxu0 0
        %1264 = vmatprep.subr.bf16.mxu0 0
        %1265 = vmatpush2.bf16.msra.mxu0 0
        %1266 = vmatprep.subr.bf16.mxu0 0
        %1267 = vmatpush2.bf16.msra.mxu0 0
        %1268 = vmatprep.subr.bf16.mxu0 0
        %1269 = vmatpush2.bf16.msra.mxu0 0
        %1270 = vmatprep.subr.bf16.mxu0 0
        %1271 = vmatpush2.bf16.msra.mxu0 0
        %1272 = vmatprep.subr.bf16.mxu0 0
        %1273 = vmatpush2.bf16.msra.mxu0 0
        %1274 = vmatprep.subr.bf16.mxu0 0
        %1275 = vmatpush2.bf16.msra.mxu0 0
        %1276 = vmatprep.mubr.bf16.mxu0 0
        %1277 = vmatmul.mubr.bf16.gmra.mxu0 %v1242
        %v1278 = vpop.f32.mrf.mxu0
        %v1279 = vadd.f32 %v1227, %v1278
        %v1280 = vpop.f32.mrf.mxu0
        %v1281 = vpop.f32.mrf.mxu0
        %v1282 = vpop.f32.mrf.mxu0
        %1283 = vdwg.mxu0
        %v1284 = vmax.f32 %v1279, 0.0
        %v1285 = vpack.c.bf16 %v1284, %v1284
        %v1286 = vld [vmem:[%s6] sm:$0xf]
        %v1287 = vld [vmem:[%s6 + $0x4] sm:$0xf]
        %v1288 = vld [vmem:[%s6 + $0x8] sm:$0xf]
        %v1289 = vld [vmem:[%s6 + $0xc] sm:$0xf]
        %v1290 = vld [vmem:[%s6 + $0x10] sm:$0xf]
        %v1291 = vld [vmem:[%s6 + $0x14] sm:$0xf]
        %v1292 = vld [vmem:[%s6 + $0x18] sm:$0xf]
        %v1293 = vld [vmem:[%s6 + $0x1c] sm:$0xf]
        %v1294 = vld [vmem:[%s6 + $0x20] sm:$0xf]
        %v1295 = vld [vmem:[%s6 + $0x24] sm:$0xf]
        %v1296 = vld [vmem:[%s6 + $0x28] sm:$0xf]
        %v1297 = vld [vmem:[%s6 + $0x2c] sm:$0xf]
        %v1298 = vld [vmem:[%s6 + $0x30] sm:$0xf]
        %v1299 = vld [vmem:[%s6 + $0x34] sm:$0xf]
        %v1300 = vld [vmem:[%s6 + $0x38] sm:$0xf]
        %v1301 = vld [vmem:[%s6 + $0x3c] sm:$0xf]
        %v1302 = vld [vmem:[%s7] sm:$0x1]
        %v1304 = vlaneseq
        %v1305 = vshrl.u32 %v1304, 7
        %v1306 = vsub.s32 0, %v1305
        %v1307 = vrot.slane %v1302, %v1306
        %v1325 = vunpack.c.l.b16 %v1286
        %v1326 = vunpack.c.l.b16 %v1287
        %v1327 = vunpack.c.l.b16 %v1288
        %v1328 = vunpack.c.l.b16 %v1289
        %v1329 = vunpack.c.l.b16 %v1290
        %v1330 = vunpack.c.l.b16 %v1291
        %v1331 = vunpack.c.l.b16 %v1292
        %v1332 = vunpack.c.l.b16 %v1293
        %v1333 = vunpack.c.l.b16 %v1294
        %v1334 = vunpack.c.l.b16 %v1295
        %v1335 = vunpack.c.l.b16 %v1296
        %v1336 = vunpack.c.l.b16 %v1297
        %v1337 = vunpack.c.l.b16 %v1298
        %v1338 = vunpack.c.l.b16 %v1299
        %v1339 = vunpack.c.l.b16 %v1300
        %v1340 = vunpack.c.l.b16 %v1301
        %v1341 = vpack.c.b16 %v1326, %v1325
        %v1342 = vpack.c.b16 %v1328, %v1327
        %v1343 = vpack.c.b16 %v1330, %v1329
        %v1344 = vpack.c.b16 %v1332, %v1331
        %v1345 = vpack.c.b16 %v1334, %v1333
        %v1346 = vpack.c.b16 %v1336, %v1335
        %v1347 = vpack.c.b16 %v1338, %v1337
        %v1348 = vpack.c.b16 %v1340, %v1339
        %1357 = vmatprep.subr.bf16.mxu0 0
        %1358 = vmatpush1.bf16.msra.mxu0 %v1348
        %1359 = vmatprep.subr.bf16.mxu0 0
        %1360 = vmatpush1.bf16.msra.mxu0 %v1347
        %1361 = vmatprep.subr.bf16.mxu0 0
        %1362 = vmatpush1.bf16.msra.mxu0 %v1346
        %1363 = vmatprep.subr.bf16.mxu0 0
        %1364 = vmatpush1.bf16.msra.mxu0 %v1345
        %1365 = vmatprep.subr.bf16.mxu0 0
        %1366 = vmatpush1.bf16.msra.mxu0 %v1344
        %1367 = vmatprep.subr.bf16.mxu0 0
        %1368 = vmatpush1.bf16.msra.mxu0 %v1343
        %1369 = vmatprep.subr.bf16.mxu0 0
        %1370 = vmatpush1.bf16.msra.mxu0 %v1342
        %1371 = vmatprep.subr.bf16.mxu0 0
        %1372 = vmatpush1.bf16.msra.mxu0 %v1341
        %1373 = vmatprep.subr.bf16.mxu0 0
        %1374 = vmatpush2.bf16.msra.mxu0 0
        %1375 = vmatprep.subr.bf16.mxu0 0
        %1376 = vmatpush2.bf16.msra.mxu0 0
        %1377 = vmatprep.subr.bf16.mxu0 0
        %1378 = vmatpush2.bf16.msra.mxu0 0
        %1379 = vmatprep.subr.bf16.mxu0 0
        %1380 = vmatpush2.bf16.msra.mxu0 0
        %1381 = vmatprep.subr.bf16.mxu0 0
        %1382 = vmatpush2.bf16.msra.mxu0 0
        %1383 = vmatprep.subr.bf16.mxu0 0
        %1384 = vmatpush2.bf16.msra.mxu0 0
        %1385 = vmatprep.subr.bf16.mxu0 0
        %1386 = vmatpush2.bf16.msra.mxu0 0
        %1387 = vmatprep.subr.bf16.mxu0 0
        %1388 = vmatpush2.bf16.msra.mxu0 0
        %1389 = vmatprep.mubr.bf16.mxu0 0
        %1390 = vmatmul.mubr.bf16.gmra.mxu0 %v1285
        %v1391 = vpop.f32.mrf.mxu0
        %v1392 = vadd.f32 %v1307, %v1391
        %v1393 = vpop.f32.mrf.mxu0
        %v1394 = vpop.f32.mrf.mxu0
        %v1395 = vpop.f32.mrf.mxu0
        %1396 = vdwg.mxu0
        %v1397 = vadd.f32 %v1216, %v1392
        %v1398 = vld [vmem:[%s10] sm:$0x1]
        %v1399 = vld [vmem:[%s11] sm:$0x1]
        %v1400 = vsel %vm443, %v1397, 0.0
        %1401 = vadd.xlane.f32.xlu0 %v1400
        %v1402 = vpop.xlane.xlu0 %1401
        %v1403 = vmul.f32 %v1402, %v1192
        %v1404 = vsub.f32 %v1397, %v1403
        %v1405 = vmul.f32 %v1404, %v1404
        %v1406 = vsel %vm443, %v1405, 0.0
        %1407 = vadd.xlane.f32.xlu0 %v1406
        %v1408 = vpop.xlane.xlu0 %1407
        %v1409 = vmul.f32 %v1408, %v1192
        %v1410 = vadd.f32 %v1409, 1e-05
        %v1411 = vrsqrt.pop %v1410
        %v1412 = vmul.f32 %v1404, %v1411
        %v1414 = vlaneseq
        %v1415 = vshrl.u32 %v1414, 7
        %v1416 = vsub.s32 0, %v1415
        %v1417 = vrot.slane %v1398, %v1416
        %v1419 = vmul.f32 %v1412, %v1417
        %v1421 = vlaneseq
        %v1422 = vshrl.u32 %v1421, 7
        %v1423 = vsub.s32 0, %v1422
        %v1424 = vrot.slane %v1399, %v1423
        %v1426 = vadd.f32 %v1419, %v1424
        %1427 = vst.msk [vmem:[%s419] sm:$0xff] %vm443, %v1426
        %s1428 = sand.u32 %s292, 1
        %s1429 = scalar_lea.sflag [#allocation8], %s1428
        %s1430 = sand.u32 %s292, 1
        %s1431 = smul.addr %s1430, 8
        %s1432 = scalar_lea.vmem [#allocation9], %s1431
        // Predicated region
        $region73: #{tpu_custom_call.1} parent=67 // pred_check
          %p1433 = pneg %p302
        $region74: #{tpu_custom_call.1} parent=67 // pred_check_branch
          %1435 = sbr.rel (%p1433) target = $region76
        $region75: #{tpu_custom_call.1} parent=67 // pred_region
          %s1437 = ssub.s32 128, 128
          %1438 = vsyncadd %s1429, %s1437
          %s1439 = smul.addr %s27, 128
          %s1440 = scalar_lea.hbm %s12, %s1439
          %s1442 = sshll.u32 %s1432, 4
          %s1443 = int_to_ptr.vmem [resolvable:$true] %s1442
          %1445 = dma.vmem_to_hbm [thread:$0]  %s1443, 128, %s1440, %s1429
        $region76: #{tpu_custom_call.1} parent=67 // pred_fallthru
          _
      $region68: #{tpu_custom_call.1} parent=5 // pred_fallthru
        _
      %p1446 = scmp.le.s32.totalorder 2, %s22
      // Predicated region
      $region77: #{tpu_custom_call.1} parent=5 // pred_check
        %p1447 = pneg %p1446
      $region78: #{tpu_custom_call.1} parent=5 // pred_check_branch
        %1449 = sbr.rel (%p1447) target = $region80
      $region79: #{tpu_custom_call.1} parent=5 // pred_region
        %s1450 = ssub.s32 %s22, 2
        // Predicated region
        $region81: #{tpu_custom_call.1} parent=79 // pred_check
          %p1451 = pneg %p308
        $region82: #{tpu_custom_call.1} parent=79 // pred_check_branch
          %1453 = sbr.rel (%p1451) target = $region84
        $region83: #{tpu_custom_call.1} parent=79 // pred_region
          %s1454 = sand.u32 %s293, 1
          %s1455 = scalar_lea.sflag [#allocation8], %s1454
          %s1456 = sand.u32 %s293, 1
          %s1457 = smul.addr %s1456, 8
          %s1458 = scalar_lea.vmem [#allocation9], %s1457
          %1459 = dma.done %s1455, 128
        $region84: #{tpu_custom_call.1} parent=79 // pred_fallthru
          _
      $region80: #{tpu_custom_call.1} parent=5 // pred_fallthru
        _
    $region6: #{tpu_custom_call.1} parent=1 // loop_footer
      %s26 = sadd.s32 1, %s22
    $region7: #{tpu_custom_call.1} parent=1 // loop_footer_branch
      %21 = sbr.rel target = $region3
    $region8: #{tpu_custom_call.1} parent=1 // loop_exit
      _
    %1460 = vsyncpa [#allocation7], 1
    %s1461 = scalar_lea.sflag [#allocation7], 1
    %1462 = vsyncpa %s1461, 1
    %1463 = vsyncpa [#allocation8], 1
    %s1464 = scalar_lea.sflag [#allocation8], 1
    %1465 = vsyncpa %s1464, 1

</llo_original>
